<compile_context>
chip_gen: v5e
topology: v5e:2x2
jax: 0.10.0
libtpu: 0.0.40
codegen_flags: <defaults>
</compile_context>

<pallas_src>
import math

import numpy as np
import jax
import jax.numpy as jnp
from jax import lax
from jax.experimental import pallas as pl
from jax.experimental.pallas import tpu as pltpu


# ---------------------------------------------------------------------------
# Banded GEMM weights (unpadded-W, stacked over kh):
#   (KH, KW, Cin, Cout) HWIO  ->  (KH*W*Cin, W*Cout)  with
#   B[kh*W*Cin + w_in*Cin + ci, w_out*Cout + co] = w_hwio[kh, kw, ci, co],
#   kw = w_in - w_out + pad  (out-of-range taps are zero => W zero-padding is implicit).
# A conv becomes a single matmul over an activation slab whose kh-th lane segment holds
# input row (h + kh - pad).
# ---------------------------------------------------------------------------
def band_weights(w_hwio, w_len, pad):
    KH, KW, Cin, Cout = w_hwio.shape
    blocks = []
    for kh in range(KH):
        m = jnp.zeros((w_len, Cin, w_len, Cout), w_hwio.dtype)
        for kw in range(KW):
            sel = jnp.eye(w_len, w_len, k=pad - kw, dtype=w_hwio.dtype)  # w_in -> w_out map
            m = m + sel[:, None, :, None] * w_hwio[kh, kw][None, :, None, :]
        blocks.append(m.reshape(w_len * Cin, w_len * Cout))
    return jnp.concatenate(blocks, axis=0)


def prepare_down0_weights(params, H, W):
    """One-time transform: HWIO conv weights -> stacked bf16 band matrices."""
    Hh, Wh = H // 2, W // 2
    C0 = params["conv0"].shape[3]        # 16

    w0 = band_weights(params["conv0"], W, 2)          # (5*W, W*C0)
    # Permute conv0 output columns to (w-parity, w/2, channel) so the W-direction of
    # MaxPool2d(2) becomes a max over contiguous lane halves inside the kernel.
    newcols = np.arange(W * C0)
    pw = newcols // (Wh * C0)
    wh = (newcols % (Wh * C0)) // C0
    co = newcols % C0
    w0 = w0[:, (2 * wh + pw) * C0 + co]

    wt = band_weights(params["trans"], Wh, 1)         # (3*Wh*C0, Wh*C1)
    w1 = band_weights(params["conv1"], Wh, 1)         # (3*Wh*C1, Wh*C1)
    w2 = band_weights(params["conv2"], Wh, 1)         # (3*Wh*C1, Wh*C1)

    bf16 = jnp.bfloat16
    return w0.astype(bf16), wt.astype(bf16), w1.astype(bf16), w2.astype(bf16)


# ---------------------------------------------------------------------------
# Fused Down0 kernel.
# ---------------------------------------------------------------------------
def _make_down0_kernel(N, H, W, C0, C1):
    Hh, Wh = H // 2, W // 2
    HN = Hh * N               # rows per h-parity (conv0) == pooled/output rows
    S1 = Wh * C0              # 128-lane segment (trans input)
    S2 = Wh * C1              # 256-lane segment (conv1/conv2 input, all outputs)
    f32, bf16 = jnp.float32, jnp.bfloat16

    def kernel(x_ref, w0_ref, wt_ref, w1_ref, w2_ref, o_ref,
               slab0_ref, poolp_ref, padr_ref):
        # ---- conv0 slab: rows (h-parity, h/2, image), K = 5 taps x W ----------
        # x_ref[s, q*N + n, w] = x[n, 2q+s, w]   (even/odd input rows pre-split).
        slab0_ref[...] = jnp.zeros_like(slab0_ref)
        for parity in range(2):
            for kh in range(5):
                t = parity + kh - 2          # input row = 2*hh + t
                s = t % 2                    # source row parity
                d = (t - s) // 2             # source hh offset
                lo, hi = max(0, -d), min(Hh, Hh - d)
                if lo >= hi:
                    continue
                slab0_ref[parity * HN + lo * N: parity * HN + hi * N,
                          kh * W:(kh + 1) * W] = x_ref[s, (lo + d) * N:(hi + d) * N, :]

        # ---- Down0.conv (5x5, 1->16) + ReLU: one bf16 GEMM, K = 5W ------------
        a0 = jnp.dot(slab0_ref[...].astype(bf16), w0_ref[...],
                     preferred_element_type=f32)
        a0 = jnp.maximum(a0, 0.0)            # (2*HN, 2*S1); cols = (w-parity, w/2, c)

        # ---- Down0.down = MaxPool2d(2): two VPU maxes over contiguous halves --
        ph = jnp.maximum(a0[:HN], a0[HN:])               # H direction (row halves)
        pooled = jnp.maximum(ph[:, :S1], ph[:, S1:])     # W direction (lane halves)

        # ---- ResBlock.trans (3x3, 16->32), no relu -----------------------------
        poolp_ref[0:N, :] = jnp.zeros((N, S1), f32)
        poolp_ref[(Hh + 1) * N:(Hh + 2) * N, :] = jnp.zeros((N, S1), f32)
        poolp_ref[N:(Hh + 1) * N, :] = pooled
        slab_t = jnp.concatenate(
            [poolp_ref[kh * N:(kh + Hh) * N, :] for kh in range(3)], axis=1)
        xr = jnp.dot(slab_t.astype(bf16), wt_ref[...], preferred_element_type=f32)

        # ---- ResBlock.conv1 + ReLU ---------------------------------------------
        padr_ref[0:N, :] = jnp.zeros((N, S2), f32)
        padr_ref[(Hh + 1) * N:(Hh + 2) * N, :] = jnp.zeros((N, S2), f32)
        padr_ref[N:(Hh + 1) * N, :] = xr
        slab1 = jnp.concatenate(
            [padr_ref[kh * N:(kh + Hh) * N, :] for kh in range(3)], axis=1)
        h1 = jnp.maximum(
            jnp.dot(slab1.astype(bf16), w1_ref[...], preferred_element_type=f32), 0.0)

        # ---- ResBlock.conv2 + ReLU + skip --------------------------------------
        padr_ref[N:(Hh + 1) * N, :] = h1     # border rows remain zero
        slab2 = jnp.concatenate(
            [padr_ref[kh * N:(kh + Hh) * N, :] for kh in range(3)], axis=1)
        out = jnp.maximum(
            jnp.dot(slab2.astype(bf16), w2_ref[...], preferred_element_type=f32),
            0.0) + xr

        o_ref[...] = out                     # dense 256-lane store, rows (h, n)

    return kernel


# ---------------------------------------------------------------------------
# Down0 forward. Accepts NCHW (PyTorch convention), returns NCHW.
# ---------------------------------------------------------------------------
@jax.jit
def down0_forward(x_nchw, w0_band, wt_band, w1_band, w2_band):
    N, Cin, H, W = x_nchw.shape
    assert Cin == 1 and H % 2 == 0 and W % 2 == 0
    Hh, Wh = H // 2, W // 2
    C0 = w0_band.shape[1] // W      # 16
    C1 = wt_band.shape[1] // Wh     # 32

    # Pre-split input rows by parity: xsp[s, q*N + n, w] = x[n, 2q+s, w].
    x1 = x_nchw[:, 0]
    xsp = jnp.stack([x1[:, 0::2, :], x1[:, 1::2, :]], axis=0)        # (2, N, H/2, W)
    xsp = jnp.transpose(xsp, (0, 2, 1, 3)).reshape(2, Hh * N, W)

    kernel = _make_down0_kernel(N, H, W, C0, C1)
    vmem = pltpu.MemorySpace.VMEM
    out_flat = pl.pallas_call(
        kernel,
        out_shape=jax.ShapeDtypeStruct((Hh * N, Wh * C1), jnp.float32),
        in_specs=[pl.BlockSpec(memory_space=vmem)] * 5,
        out_specs=pl.BlockSpec(memory_space=vmem),
        scratch_shapes=[
            pltpu.VMEM((2 * Hh * N, 5 * W), jnp.float32),        # conv0 slab
            pltpu.VMEM(((Hh + 2) * N, Wh * C0), jnp.float32),    # H-padded pooled
            pltpu.VMEM(((Hh + 2) * N, Wh * C1), jnp.float32),    # H-padded xr / h1 (reused)
        ],
    )(xsp, w0_band, wt_band, w1_band, w2_band)

    out = out_flat.reshape(Hh, N, Wh, C1)          # rows = (h, n), lanes = (w, c)
    return jnp.transpose(out, (1, 3, 0, 2))        # back to NCHW


# ---------------------------------------------------------------------------
# Parameter init (matches PyTorch: weight ~ N(0, sqrt(2 / (k*k*out))), bias=False).
# ---------------------------------------------------------------------------
def init_params(key):
    def make_w(key, cout, cin, k):
        std = math.sqrt(2.0 / (k * k * cout))
        w_oihw = jax.random.normal(key, (cout, cin, k, k), jnp.float32) * std
        return jnp.transpose(w_oihw, (2, 3, 1, 0))        # HWIO
    k0, k1, k2, k3 = jax.random.split(key, 4)
    return {
        "conv0": make_w(k0, 16, 1, 5),    # Down0.conv      1 -> 16, 5x5
        "trans": make_w(k1, 32, 16, 3),   # ResBlock.trans 16 -> 32
        "conv1": make_w(k2, 32, 32, 3),   # ResBlock.conv1 32 -> 32
        "conv2": make_w(k3, 32, 32, 3),   # ResBlock.conv2 32 -> 32
    }


# ---------------------------------------------------------------------------
# Pure-JAX reference for correctness checking (f32, highest precision).
# ---------------------------------------------------------------------------
def _ref_conv(x_nhwc, w_hwio, pad):
    return lax.conv_general_dilated(
        x_nhwc, w_hwio, window_strides=(1, 1),
        padding=[(pad, pad), (pad, pad)],
        dimension_numbers=("NHWC", "HWIO", "NHWC"),
        precision=lax.Precision.HIGHEST)


def down0_reference(x_nchw, p):
    x = jnp.transpose(x_nchw, (0, 2, 3, 1))
    out = jax.nn.relu(_ref_conv(x, p["conv0"], 2))
    N, H, W, C = out.shape
    out = out.reshape(N, H // 2, 2, W // 2, 2, C).max(axis=(2, 4))
    xr = _ref_conv(out, p["trans"], 1)
    h = jax.nn.relu(_ref_conv(xr, p["conv1"], 1))
    h = jax.nn.relu(_ref_conv(h, p["conv2"], 1)) + xr
    return jnp.transpose(h, (0, 3, 1, 2))


if __name__ == "__main__":
    key = jax.random.PRNGKey(0)
    kx, kp = jax.random.split(key)

    # Down0 takes a single-channel image (in_channels=1), NCHW like PyTorch.
    x = jax.random.normal(kx, (2, 1, 16, 16), jnp.float32)
    params = init_params(kp)

    # One-time weight transform into stacked bf16 banded GEMM form.
    w0_band, wt_band, w1_band, w2_band = prepare_down0_weights(params, 16, 16)

    out = jax.block_until_ready(down0_forward(x, w0_band, wt_band, w1_band, w2_band))

    ref = down0_reference(x, params)
    assert out.shape == (2, 32, 8, 8), out.shape
    err_max = float(jnp.max(jnp.abs(out - ref)))
    err_mean = float(jnp.mean(jnp.abs(out - ref)))
    # bf16 band weights / activation slabs => tolerance loosened vs the f32 reference.
    assert err_max < 1e-1 and err_mean < 1e-2, (err_max, err_mean)

    print("KERNEL_OK")
</pallas_src>

<mosaic_0001>
module attributes {stable_mosaic.version = 11 : i64} {
  func.func @kernel(%arg0: memref<2x16x16xf32, #tpu.memory_space<vmem>>, %arg1: memref<80x256xbf16, #tpu.memory_space<vmem>>, %arg2: memref<384x256xbf16, #tpu.memory_space<vmem>>, %arg3: memref<768x256xbf16, #tpu.memory_space<vmem>>, %arg4: memref<768x256xbf16, #tpu.memory_space<vmem>>, %arg5: memref<16x256xf32, #tpu.memory_space<vmem>>, %arg6: memref<32x80xf32, #tpu.memory_space<vmem>>, %arg7: memref<20x128xf32, #tpu.memory_space<vmem>>, %arg8: memref<20x256xf32, #tpu.memory_space<vmem>>) attributes {dimension_semantics = [], scalar_prefetch = 0 : i64, scratch_operands = 3 : i64, tpu.core_type = #tpu.core_type<tc>} {
    %cst = arith.constant 0.000000e+00 : f32
    %0 = vector.broadcast %cst : f32 to vector<32x80xf32>
    %c0 = arith.constant 0 : index
    %c0_0 = arith.constant 0 : index
    %1 = vector.load %arg6[%c0, %c0_0] : memref<32x80xf32, #tpu.memory_space<vmem>>, vector<32x80xf32>
    tpu.vector_store %arg6[%c0, %c0_0], %0 {strides = array<i32>} : memref<32x80xf32, #tpu.memory_space<vmem>>, vector<32x80xf32>,
    %c0_1 = arith.constant 0 : index
    %c0_2 = arith.constant 0 : index
    %c0_3 = arith.constant 0 : index
    %2 = vector.load %arg0[%c0_1, %c0_2, %c0_3] : memref<2x16x16xf32, #tpu.memory_space<vmem>>, vector<1x14x16xf32>
    %3 = vector.shape_cast %2 : vector<1x14x16xf32> to vector<14x16xf32>
    %c2 = arith.constant 2 : index
    %c0_4 = arith.constant 0 : index
    %4 = vector.load %arg6[%c2, %c0_4] : memref<32x80xf32, #tpu.memory_space<vmem>>, vector<14x16xf32>
    tpu.vector_store %arg6[%c2, %c0_4], %3 {strides = array<i32>} : memref<32x80xf32, #tpu.memory_space<vmem>>, vector<14x16xf32>,
    %c1 = arith.constant 1 : index
    %c0_5 = arith.constant 0 : index
    %c0_6 = arith.constant 0 : index
    %5 = vector.load %arg0[%c1, %c0_5, %c0_6] : memref<2x16x16xf32, #tpu.memory_space<vmem>>, vector<1x14x16xf32>
    %6 = vector.shape_cast %5 : vector<1x14x16xf32> to vector<14x16xf32>
    %c2_7 = arith.constant 2 : index
    %c16 = arith.constant 16 : index
    %7 = vector.load %arg6[%c2_7, %c16] : memref<32x80xf32, #tpu.memory_space<vmem>>, vector<14x16xf32>
    tpu.vector_store %arg6[%c2_7, %c16], %6 {strides = array<i32>} : memref<32x80xf32, #tpu.memory_space<vmem>>, vector<14x16xf32>,
    %c0_8 = arith.constant 0 : index
    %c0_9 = arith.constant 0 : index
    %c0_10 = arith.constant 0 : index
    %8 = vector.load %arg0[%c0_8, %c0_9, %c0_10] : memref<2x16x16xf32, #tpu.memory_space<vmem>>, vector<1x16x16xf32>
    %9 = vector.shape_cast %8 : vector<1x16x16xf32> to vector<16x16xf32>
    %c0_11 = arith.constant 0 : index
    %c32 = arith.constant 32 : index
    %10 = vector.load %arg6[%c0_11, %c32] : memref<32x80xf32, #tpu.memory_space<vmem>>, vector<16x16xf32>
    tpu.vector_store %arg6[%c0_11, %c32], %9 {strides = array<i32>} : memref<32x80xf32, #tpu.memory_space<vmem>>, vector<16x16xf32>,
    %c1_12 = arith.constant 1 : index
    %c0_13 = arith.constant 0 : index
    %c0_14 = arith.constant 0 : index
    %11 = vector.load %arg0[%c1_12, %c0_13, %c0_14] : memref<2x16x16xf32, #tpu.memory_space<vmem>>, vector<1x16x16xf32>
    %12 = vector.shape_cast %11 : vector<1x16x16xf32> to vector<16x16xf32>
    %c0_15 = arith.constant 0 : index
    %c48 = arith.constant 48 : index
    %13 = vector.load %arg6[%c0_15, %c48] : memref<32x80xf32, #tpu.memory_space<vmem>>, vector<16x16xf32>
    tpu.vector_store %arg6[%c0_15, %c48], %12 {strides = array<i32>} : memref<32x80xf32, #tpu.memory_space<vmem>>, vector<16x16xf32>,
    %c0_16 = arith.constant 0 : index
    %c2_17 = arith.constant 2 : index
    %c0_18 = arith.constant 0 : index
    %14 = vector.load %arg0[%c0_16, %c2_17, %c0_18] : memref<2x16x16xf32, #tpu.memory_space<vmem>>, vector<1x14x16xf32>
    %15 = vector.shape_cast %14 : vector<1x14x16xf32> to vector<14x16xf32>
    %c0_19 = arith.constant 0 : index
    %c64 = arith.constant 64 : index
    %16 = vector.load %arg6[%c0_19, %c64] : memref<32x80xf32, #tpu.memory_space<vmem>>, vector<14x16xf32>
    tpu.vector_store %arg6[%c0_19, %c64], %15 {strides = array<i32>} : memref<32x80xf32, #tpu.memory_space<vmem>>, vector<14x16xf32>,
    %c1_20 = arith.constant 1 : index
    %c0_21 = arith.constant 0 : index
    %c0_22 = arith.constant 0 : index
    %17 = vector.load %arg0[%c1_20, %c0_21, %c0_22] : memref<2x16x16xf32, #tpu.memory_space<vmem>>, vector<1x14x16xf32>
    %18 = vector.shape_cast %17 : vector<1x14x16xf32> to vector<14x16xf32>
    %c18 = arith.constant 18 : index
    %c0_23 = arith.constant 0 : index
    %19 = vector.load %arg6[%c18, %c0_23] : memref<32x80xf32, #tpu.memory_space<vmem>>, vector<14x16xf32>
    tpu.vector_store %arg6[%c18, %c0_23], %18 {strides = array<i32>} : memref<32x80xf32, #tpu.memory_space<vmem>>, vector<14x16xf32>,
    %c0_24 = arith.constant 0 : index
    %c0_25 = arith.constant 0 : index
    %c0_26 = arith.constant 0 : index
    %20 = vector.load %arg0[%c0_24, %c0_25, %c0_26] : memref<2x16x16xf32, #tpu.memory_space<vmem>>, vector<1x16x16xf32>
    %21 = vector.shape_cast %20 : vector<1x16x16xf32> to vector<16x16xf32>
    %c16_27 = arith.constant 16 : index
    %c16_28 = arith.constant 16 : index
    %22 = vector.load %arg6[%c16_27, %c16_28] : memref<32x80xf32, #tpu.memory_space<vmem>>, vector<16x16xf32>
    tpu.vector_store %arg6[%c16_27, %c16_28], %21 {strides = array<i32>} : memref<32x80xf32, #tpu.memory_space<vmem>>, vector<16x16xf32>,
    %c1_29 = arith.constant 1 : index
    %c0_30 = arith.constant 0 : index
    %c0_31 = arith.constant 0 : index
    %23 = vector.load %arg0[%c1_29, %c0_30, %c0_31] : memref<2x16x16xf32, #tpu.memory_space<vmem>>, vector<1x16x16xf32>
    %24 = vector.shape_cast %23 : vector<1x16x16xf32> to vector<16x16xf32>
    %c16_32 = arith.constant 16 : index
    %c32_33 = arith.constant 32 : index
    %25 = vector.load %arg6[%c16_32, %c32_33] : memref<32x80xf32, #tpu.memory_space<vmem>>, vector<16x16xf32>
    tpu.vector_store %arg6[%c16_32, %c32_33], %24 {strides = array<i32>} : memref<32x80xf32, #tpu.memory_space<vmem>>, vector<16x16xf32>,
    %c0_34 = arith.constant 0 : index
    %c2_35 = arith.constant 2 : index
    %c0_36 = arith.constant 0 : index
    %26 = vector.load %arg0[%c0_34, %c2_35, %c0_36] : memref<2x16x16xf32, #tpu.memory_space<vmem>>, vector<1x14x16xf32>
    %27 = vector.shape_cast %26 : vector<1x14x16xf32> to vector<14x16xf32>
    %c16_37 = arith.constant 16 : index
    %c48_38 = arith.constant 48 : index
    %28 = vector.load %arg6[%c16_37, %c48_38] : memref<32x80xf32, #tpu.memory_space<vmem>>, vector<14x16xf32>
    tpu.vector_store %arg6[%c16_37, %c48_38], %27 {strides = array<i32>} : memref<32x80xf32, #tpu.memory_space<vmem>>, vector<14x16xf32>,
    %c1_39 = arith.constant 1 : index
    %c2_40 = arith.constant 2 : index
    %c0_41 = arith.constant 0 : index
    %29 = vector.load %arg0[%c1_39, %c2_40, %c0_41] : memref<2x16x16xf32, #tpu.memory_space<vmem>>, vector<1x14x16xf32>
    %30 = vector.shape_cast %29 : vector<1x14x16xf32> to vector<14x16xf32>
    %c16_42 = arith.constant 16 : index
    %c64_43 = arith.constant 64 : index
    %31 = vector.load %arg6[%c16_42, %c64_43] : memref<32x80xf32, #tpu.memory_space<vmem>>, vector<14x16xf32>
    tpu.vector_store %arg6[%c16_42, %c64_43], %30 {strides = array<i32>} : memref<32x80xf32, #tpu.memory_space<vmem>>, vector<14x16xf32>,
    %c0_44 = arith.constant 0 : index
    %c0_45 = arith.constant 0 : index
    %32 = vector.load %arg6[%c0_44, %c0_45] : memref<32x80xf32, #tpu.memory_space<vmem>>, vector<32x80xf32>
    %33 = arith.truncf %32 : vector<32x80xf32> to vector<32x80xbf16>
    %c0_46 = arith.constant 0 : index
    %c0_47 = arith.constant 0 : index
    %34 = vector.load %arg1[%c0_46, %c0_47] : memref<80x256xbf16, #tpu.memory_space<vmem>>, vector<80x256xbf16>
    %cst_48 = arith.constant dense<0.000000e+00> : vector<32x256xf32>
    %35 = tpu.matmul %33, %34, %cst_48 {dimension_numbers = #tpu.dot_dimension_numbers<[1], [0], [0], [1], [0, 0, 1, 1], [], []>} : vector<32x80xbf16>, vector<80x256xbf16>, vector<32x256xf32> -> vector<32x256xf32>
    %cst_49 = arith.constant 0.000000e+00 : f32
    %36 = vector.broadcast %cst_49 : f32 to vector<32x256xf32>
    %37 = arith.maximumf %35, %36 : vector<32x256xf32>
    %38 = vector.extract_strided_slice %37 {offsets = [0, 0], sizes = [16, 256], strides = [1, 1]} : vector<32x256xf32> to vector<16x256xf32>
    %39 = vector.extract_strided_slice %37 {offsets = [16, 0], sizes = [16, 256], strides = [1, 1]} : vector<32x256xf32> to vector<16x256xf32>
    %40 = arith.maximumf %38, %39 : vector<16x256xf32>
    %41 = vector.extract_strided_slice %40 {offsets = [0, 0], sizes = [16, 128], strides = [1, 1]} : vector<16x256xf32> to vector<16x128xf32>
    %42 = vector.extract_strided_slice %40 {offsets = [0, 128], sizes = [16, 128], strides = [1, 1]} : vector<16x256xf32> to vector<16x128xf32>
    %43 = arith.maximumf %41, %42 : vector<16x128xf32>
    %cst_50 = arith.constant 0.000000e+00 : f32
    %44 = vector.broadcast %cst_50 : f32 to vector<2x128xf32>
    %c0_51 = arith.constant 0 : index
    %c0_52 = arith.constant 0 : index
    %45 = vector.load %arg7[%c0_51, %c0_52] : memref<20x128xf32, #tpu.memory_space<vmem>>, vector<2x128xf32>
    tpu.vector_store %arg7[%c0_51, %c0_52], %44 {strides = array<i32>} : memref<20x128xf32, #tpu.memory_space<vmem>>, vector<2x128xf32>,
    %cst_53 = arith.constant 0.000000e+00 : f32
    %46 = vector.broadcast %cst_53 : f32 to vector<2x128xf32>
    %c18_54 = arith.constant 18 : index
    %c0_55 = arith.constant 0 : index
    %47 = vector.load %arg7[%c18_54, %c0_55] : memref<20x128xf32, #tpu.memory_space<vmem>>, vector<2x128xf32>
    tpu.vector_store %arg7[%c18_54, %c0_55], %46 {strides = array<i32>} : memref<20x128xf32, #tpu.memory_space<vmem>>, vector<2x128xf32>,
    %c2_56 = arith.constant 2 : index
    %c0_57 = arith.constant 0 : index
    %48 = vector.load %arg7[%c2_56, %c0_57] : memref<20x128xf32, #tpu.memory_space<vmem>>, vector<16x128xf32>
    tpu.vector_store %arg7[%c2_56, %c0_57], %43 {strides = array<i32>} : memref<20x128xf32, #tpu.memory_space<vmem>>, vector<16x128xf32>,
    %c0_58 = arith.constant 0 : index
    %c0_59 = arith.constant 0 : index
    %49 = vector.load %arg7[%c0_58, %c0_59] : memref<20x128xf32, #tpu.memory_space<vmem>>, vector<16x128xf32>
    %c2_60 = arith.constant 2 : index
    %c0_61 = arith.constant 0 : index
    %50 = vector.load %arg7[%c2_60, %c0_61] : memref<20x128xf32, #tpu.memory_space<vmem>>, vector<16x128xf32>
    %c4 = arith.constant 4 : index
    %c0_62 = arith.constant 0 : index
    %51 = vector.load %arg7[%c4, %c0_62] : memref<20x128xf32, #tpu.memory_space<vmem>>, vector<16x128xf32>
    %52 = tpu.concatenate %49, %50, %51 in 1 : vector<16x128xf32>, vector<16x128xf32>, vector<16x128xf32> -> vector<16x384xf32>
    %53 = arith.truncf %52 : vector<16x384xf32> to vector<16x384xbf16>
    %c0_63 = arith.constant 0 : index
    %c0_64 = arith.constant 0 : index
    %54 = vector.load %arg2[%c0_63, %c0_64] : memref<384x256xbf16, #tpu.memory_space<vmem>>, vector<384x256xbf16>
    %cst_65 = arith.constant dense<0.000000e+00> : vector<16x256xf32>
    %55 = tpu.matmul %53, %54, %cst_65 {dimension_numbers = #tpu.dot_dimension_numbers<[1], [0], [0], [1], [0, 0, 1, 1], [], []>} : vector<16x384xbf16>, vector<384x256xbf16>, vector<16x256xf32> -> vector<16x256xf32>
    %cst_66 = arith.constant 0.000000e+00 : f32
    %56 = vector.broadcast %cst_66 : f32 to vector<2x256xf32>
    %c0_67 = arith.constant 0 : index
    %c0_68 = arith.constant 0 : index
    %57 = vector.load %arg8[%c0_67, %c0_68] : memref<20x256xf32, #tpu.memory_space<vmem>>, vector<2x256xf32>
    tpu.vector_store %arg8[%c0_67, %c0_68], %56 {strides = array<i32>} : memref<20x256xf32, #tpu.memory_space<vmem>>, vector<2x256xf32>,
    %cst_69 = arith.constant 0.000000e+00 : f32
    %58 = vector.broadcast %cst_69 : f32 to vector<2x256xf32>
    %c18_70 = arith.constant 18 : index
    %c0_71 = arith.constant 0 : index
    %59 = vector.load %arg8[%c18_70, %c0_71] : memref<20x256xf32, #tpu.memory_space<vmem>>, vector<2x256xf32>
    tpu.vector_store %arg8[%c18_70, %c0_71], %58 {strides = array<i32>} : memref<20x256xf32, #tpu.memory_space<vmem>>, vector<2x256xf32>,
    %c2_72 = arith.constant 2 : index
    %c0_73 = arith.constant 0 : index
    %60 = vector.load %arg8[%c2_72, %c0_73] : memref<20x256xf32, #tpu.memory_space<vmem>>, vector<16x256xf32>
    tpu.vector_store %arg8[%c2_72, %c0_73], %55 {strides = array<i32>} : memref<20x256xf32, #tpu.memory_space<vmem>>, vector<16x256xf32>,
    %c0_74 = arith.constant 0 : index
    %c0_75 = arith.constant 0 : index
    %61 = vector.load %arg8[%c0_74, %c0_75] : memref<20x256xf32, #tpu.memory_space<vmem>>, vector<16x256xf32>
    %c2_76 = arith.constant 2 : index
    %c0_77 = arith.constant 0 : index
    %62 = vector.load %arg8[%c2_76, %c0_77] : memref<20x256xf32, #tpu.memory_space<vmem>>, vector<16x256xf32>
    %c4_78 = arith.constant 4 : index
    %c0_79 = arith.constant 0 : index
    %63 = vector.load %arg8[%c4_78, %c0_79] : memref<20x256xf32, #tpu.memory_space<vmem>>, vector<16x256xf32>
    %64 = tpu.concatenate %61, %62, %63 in 1 : vector<16x256xf32>, vector<16x256xf32>, vector<16x256xf32> -> vector<16x768xf32>
    %65 = arith.truncf %64 : vector<16x768xf32> to vector<16x768xbf16>
    %c0_80 = arith.constant 0 : index
    %c0_81 = arith.constant 0 : index
    %66 = vector.load %arg3[%c0_80, %c0_81] : memref<768x256xbf16, #tpu.memory_space<vmem>>, vector<768x256xbf16>
    %cst_82 = arith.constant dense<0.000000e+00> : vector<16x256xf32>
    %67 = tpu.matmul %65, %66, %cst_82 {dimension_numbers = #tpu.dot_dimension_numbers<[1], [0], [0], [1], [0, 0, 1, 1], [], []>} : vector<16x768xbf16>, vector<768x256xbf16>, vector<16x256xf32> -> vector<16x256xf32>
    %cst_83 = arith.constant 0.000000e+00 : f32
    %68 = vector.broadcast %cst_83 : f32 to vector<16x256xf32>
    %69 = arith.maximumf %67, %68 : vector<16x256xf32>
    %c2_84 = arith.constant 2 : index
    %c0_85 = arith.constant 0 : index
    %70 = vector.load %arg8[%c2_84, %c0_85] : memref<20x256xf32, #tpu.memory_space<vmem>>, vector<16x256xf32>
    tpu.vector_store %arg8[%c2_84, %c0_85], %69 {strides = array<i32>} : memref<20x256xf32, #tpu.memory_space<vmem>>, vector<16x256xf32>,
    %c0_86 = arith.constant 0 : index
    %c0_87 = arith.constant 0 : index
    %71 = vector.load %arg8[%c0_86, %c0_87] : memref<20x256xf32, #tpu.memory_space<vmem>>, vector<16x256xf32>
    %c2_88 = arith.constant 2 : index
    %c0_89 = arith.constant 0 : index
    %72 = vector.load %arg8[%c2_88, %c0_89] : memref<20x256xf32, #tpu.memory_space<vmem>>, vector<16x256xf32>
    %c4_90 = arith.constant 4 : index
    %c0_91 = arith.constant 0 : index
    %73 = vector.load %arg8[%c4_90, %c0_91] : memref<20x256xf32, #tpu.memory_space<vmem>>, vector<16x256xf32>
    %74 = tpu.concatenate %71, %72, %73 in 1 : vector<16x256xf32>, vector<16x256xf32>, vector<16x256xf32> -> vector<16x768xf32>
    %75 = arith.truncf %74 : vector<16x768xf32> to vector<16x768xbf16>
    %c0_92 = arith.constant 0 : index
    %c0_93 = arith.constant 0 : index
    %76 = vector.load %arg4[%c0_92, %c0_93] : memref<768x256xbf16, #tpu.memory_space<vmem>>, vector<768x256xbf16>
    %cst_94 = arith.constant dense<0.000000e+00> : vector<16x256xf32>
    %77 = tpu.matmul %75, %76, %cst_94 {dimension_numbers = #tpu.dot_dimension_numbers<[1], [0], [0], [1], [0, 0, 1, 1], [], []>} : vector<16x768xbf16>, vector<768x256xbf16>, vector<16x256xf32> -> vector<16x256xf32>
    %cst_95 = arith.constant 0.000000e+00 : f32
    %78 = vector.broadcast %cst_95 : f32 to vector<16x256xf32>
    %79 = arith.maximumf %77, %78 : vector<16x256xf32>
    %80 = arith.addf %79, %55 : vector<16x256xf32>
    %c0_96 = arith.constant 0 : index
    %c0_97 = arith.constant 0 : index
    %81 = vector.load %arg5[%c0_96, %c0_97] : memref<16x256xf32, #tpu.memory_space<vmem>>, vector<16x256xf32>
    tpu.vector_store %arg5[%c0_96, %c0_97], %80 {strides = array<i32>} : memref<16x256xf32, #tpu.memory_space<vmem>>, vector<16x256xf32>,
    return
  }
}

</mosaic_0001>

<llo_original>
// kernel: down0_forward.1
$region0: #{down0_forward.1}
  #allocation0 [shape = 'u32[]', space=smem, size = 0x4, offset = 0x4, fixed_abs, tag = 'smem constant byte address 0x4 - core index']
  #allocation1 [shape = 'u32[72,128]{1,0:T(1,128)}', space=vmem, size = 0x9000, scoped, tag = 'internal scratch']
  #allocation2 [shape = 'f32[32,80]{1,0:T(8,128)}', space=vmem, size = 0x4000, scoped, tag = 'scratch operand']
  #allocation3 [shape = 'f32[20,128]{1,0:T(8,128)}', space=vmem, size = 0x3000, scoped, tag = 'scratch operand']
  #allocation4 [shape = 'f32[20,256]{1,0:T(8,128)}', space=vmem, size = 0x6000, scoped, tag = 'scratch operand']
  %s0 = inlined_call_operand.vmem [shape: f32[2,16,16], index: 0, kind: input, shape index: {}]
  %s1 = inlined_call_operand.vmem [shape: bf16[80,256], index: 1, kind: input, shape index: {}]
  %s2 = inlined_call_operand.hbm [shape: bf16[384,256], index: 2, kind: input, shape index: {}]
  %s3 = inlined_call_operand.hbm [shape: bf16[768,256], index: 3, kind: input, shape index: {}]
  %s4 = inlined_call_operand.hbm [shape: bf16[768,256], index: 4, kind: input, shape index: {}]
  %s5 = inlined_call_operand.vmem [shape: f32[16,256], index: 5, kind: output, shape index: {}]
  %s6 = sld [smem:[#allocation0]]
  $region42: #{down0_forward.1} parent=0
    _
  %s8 = ssub.s32 1, %s6
  %s9 = scalar_select 0, %s8, %s6
  $region1: #{down0_forward.1} parent=0
    #allocation5 [shape = 'u8[196608]{0}', space=vmem, size = 0x30000, scoped, tag = 'input window, operand 2, single buffered']
    #allocation6 [shape = 's32[1]{0}', space=sflag, size = 0x4, scoped, tag = 'scoped memory for down0_forward.1']
    #allocation7 [shape = 'u8[393216]{0}', space=vmem, size = 0x60000, scoped, tag = 'input window, operand 3, single buffered']
    #allocation8 [shape = 's32[1]{0}', space=sflag, size = 0x4, scoped, tag = 'scoped memory for down0_forward.1']
    #allocation9 [shape = 'u8[393216]{0}', space=vmem, size = 0x60000, scoped, tag = 'input window, operand 4, single buffered']
    %10 = vsyncpa [#allocation6], 0
    %11 = vsyncpa [#allocation8], 0
    // Predicated region
    $region2: #{down0_forward.1} parent=1 // pred_check
      _
    $region3: #{down0_forward.1} parent=1 // pred_check_branch
      %13 = sbr.rel (0) target = $region5
    $region4: #{down0_forward.1} parent=1 // pred_region
      _
    $region5: #{down0_forward.1} parent=1 // pred_fallthru
      _
    // Predicated region
    $region6: #{down0_forward.1} parent=1 // pred_check
      _
    $region7: #{down0_forward.1} parent=1 // pred_check_branch
      %15 = sbr.rel (0) target = $region9
    $region8: #{down0_forward.1} parent=1 // pred_region
      _
    $region9: #{down0_forward.1} parent=1 // pred_fallthru
      _
    // Predicated region
    $region10: #{down0_forward.1} parent=1 // pred_check
      _
    $region11: #{down0_forward.1} parent=1 // pred_check_branch
      %17 = sbr.rel (0) target = $region13
    $region12: #{down0_forward.1} parent=1 // pred_region
      %19 = vsyncadd [#allocation6], 0
      %s20 = sshll.u32 %s2, 4
      %s21 = int_to_ptr.hbm [resolvable:$true] %s20
      %s22 = sshll.u32 [#allocation5], 4
      %s23 = int_to_ptr.vmem [resolvable:$true] %s22
      %28 = dma.hbm_to_vmem [thread:$0]  %s21, 6144, %s23, [#allocation6], 128, 128, 8
    $region13: #{down0_forward.1} parent=1 // pred_fallthru
      _
    // Predicated region
    $region14: #{down0_forward.1} parent=1 // pred_check
      _
    $region15: #{down0_forward.1} parent=1 // pred_check_branch
      %30 = sbr.rel (0) target = $region17
    $region16: #{down0_forward.1} parent=1 // pred_region
      %32 = vsyncadd [#allocation8], 0
      %s33 = sshll.u32 %s3, 4
      %s34 = int_to_ptr.hbm [resolvable:$true] %s33
      %s35 = sshll.u32 [#allocation7], 4
      %s36 = int_to_ptr.vmem [resolvable:$true] %s35
      %41 = dma.hbm_to_vmem [thread:$0]  %s34, 12288, %s36, [#allocation8], 128, 128, 8
    $region17: #{down0_forward.1} parent=1 // pred_fallthru
      _
    // Predicated region
    $region18: #{down0_forward.1} parent=1 // pred_check
      _
    $region19: #{down0_forward.1} parent=1 // pred_check_branch
      %43 = sbr.rel (0) target = $region21
    $region20: #{down0_forward.1} parent=1 // pred_region
      %45 = vsyncadd [#allocation8], 0
      %s46 = sshll.u32 %s4, 4
      %s47 = int_to_ptr.hbm [resolvable:$true] %s46
      %s48 = sshll.u32 [#allocation9], 4
      %s49 = int_to_ptr.vmem [resolvable:$true] %s48
      %54 = dma.hbm_to_vmem [thread:$0]  %s47, 12288, %s49, [#allocation8], 128, 128, 8
    $region21: #{down0_forward.1} parent=1 // pred_fallthru
      _
    // Predicated region
    $region22: #{down0_forward.1} parent=1 // pred_check
      _
    $region23: #{down0_forward.1} parent=1 // pred_check_branch
      %56 = sbr.rel (0) target = $region25
    $region24: #{down0_forward.1} parent=1 // pred_region
      %58 = dma.done [#allocation6], 6144
    $region25: #{down0_forward.1} parent=1 // pred_fallthru
      _
    // Predicated region
    $region26: #{down0_forward.1} parent=1 // pred_check
      _
    $region27: #{down0_forward.1} parent=1 // pred_check_branch
      %60 = sbr.rel (0) target = $region29
    $region28: #{down0_forward.1} parent=1 // pred_region
      %62 = dma.done [#allocation8], 12288
    $region29: #{down0_forward.1} parent=1 // pred_fallthru
      _
    // Predicated region
    $region30: #{down0_forward.1} parent=1 // pred_check
      _
    $region31: #{down0_forward.1} parent=1 // pred_check_branch
      %64 = sbr.rel (0) target = $region33
    $region32: #{down0_forward.1} parent=1 // pred_region
      %66 = dma.done [#allocation8], 12288
    $region33: #{down0_forward.1} parent=1 // pred_fallthru
      _
    %vm68 = vcmask 654336
    %69 = vst.msk [vmem:[#allocation2] sm:$0xff] %vm68, 0.0
    %70 = vst.msk [vmem:[#allocation2 + $0x8] sm:$0xff] %vm68, 0.0
    %71 = vst.msk [vmem:[#allocation2 + $0x10] sm:$0xff] %vm68, 0.0
    %72 = vst.msk [vmem:[#allocation2 + $0x18] sm:$0xff] %vm68, 0.0
    %v73 = vld [vmem:[%s0] sm:$0xff]
    %v74 = vld [vmem:[%s0 + $0x8] sm:$0x3f]
    %vm75 = vcmask 130048
    %76 = vst.msk [vmem:[#allocation2 + $0x2] sm:$0xff] %vm75, %v73
    %vm77 = vcmask 128000
    %78 = vst.msk [vmem:[#allocation2 + $0xa] sm:$0x3f] %vm77, %v74
    %s79 = scalar_lea.vmem %s0, 16
    %v80 = vld [vmem:[%s79] sm:$0xff]
    %v81 = vld [vmem:[%s79 + $0x8] sm:$0x3f]
    %84 = vrot.lane.b32.xlu0 %v80, 16
    %v85 = vpop.permute.xlu0 %84
    %86 = vrot.lane.b32.xlu0 %v81, 16
    %v87 = vpop.permute.xlu0 %86
    %vm90 = vcmask 261248
    %91 = vst.msk [vmem:[#allocation2 + $0x2] sm:$0xff] %vm90, %v85
    %vm92 = vcmask 259200
    %93 = vst.msk [vmem:[#allocation2 + $0xa] sm:$0x3f] %vm92, %v87
    %v94 = vld [vmem:[%s0] sm:$0xff]
    %v95 = vld [vmem:[%s0 + $0x8] sm:$0xff]
    %98 = vrot.lane.b32.xlu0 %v94, 32
    %v99 = vpop.permute.xlu0 %98
    %100 = vrot.lane.b32.xlu0 %v95, 32
    %v101 = vpop.permute.xlu0 %100
    %vm104 = vcmask 392448
    %105 = vst.msk [vmem:[#allocation2] sm:$0xff] %vm104, %v99
    %106 = vst.msk [vmem:[#allocation2 + $0x8] sm:$0xff] %vm104, %v101
    %v107 = vld [vmem:[%s79] sm:$0xff]
    %v108 = vld [vmem:[%s79 + $0x8] sm:$0xff]
    %111 = vrot.lane.b32.xlu0 %v107, 48
    %v112 = vpop.permute.xlu0 %111
    %113 = vrot.lane.b32.xlu0 %v108, 48
    %v114 = vpop.permute.xlu0 %113
    %vm117 = vcmask 523648
    %118 = vst.msk [vmem:[#allocation2] sm:$0xff] %vm117, %v112
    %119 = vst.msk [vmem:[#allocation2 + $0x8] sm:$0xff] %vm117, %v114
    %v120 = vld [vmem:[%s0 + $0x2] sm:$0xff]
    %v121 = vld [vmem:[%s0 + $0xa] sm:$0x3f]
    %124 = vrot.lane.b32.xlu0 %v120, 64
    %v125 = vpop.permute.xlu0 %124
    %126 = vrot.lane.b32.xlu0 %v121, 64
    %v127 = vpop.permute.xlu0 %126
    %vm130 = vcmask 654848
    %131 = vst.msk [vmem:[#allocation2] sm:$0xff] %vm130, %v125
    %vm132 = vcmask 652800
    %133 = vst.msk [vmem:[#allocation2 + $0x8] sm:$0x3f] %vm132, %v127
    %v134 = vld [vmem:[%s79] sm:$0xff]
    %v135 = vld [vmem:[%s79 + $0x8] sm:$0x3f]
    %136 = vst.msk [vmem:[#allocation2 + $0x12] sm:$0xff] %vm75, %v134
    %137 = vst.msk [vmem:[#allocation2 + $0x1a] sm:$0x3f] %vm77, %v135
    %v138 = vld [vmem:[%s0] sm:$0xff]
    %v139 = vld [vmem:[%s0 + $0x8] sm:$0xff]
    %142 = vrot.lane.b32.xlu0 %v138, 16
    %v143 = vpop.permute.xlu0 %142
    %144 = vrot.lane.b32.xlu0 %v139, 16
    %v145 = vpop.permute.xlu0 %144
    %148 = vst.msk [vmem:[#allocation2 + $0x10] sm:$0xff] %vm90, %v143
    %149 = vst.msk [vmem:[#allocation2 + $0x18] sm:$0xff] %vm90, %v145
    %v150 = vld [vmem:[%s79] sm:$0xff]
    %v151 = vld [vmem:[%s79 + $0x8] sm:$0xff]
    %154 = vrot.lane.b32.xlu0 %v150, 32
    %v155 = vpop.permute.xlu0 %154
    %156 = vrot.lane.b32.xlu0 %v151, 32
    %v157 = vpop.permute.xlu0 %156
    %160 = vst.msk [vmem:[#allocation2 + $0x10] sm:$0xff] %vm104, %v155
    %161 = vst.msk [vmem:[#allocation2 + $0x18] sm:$0xff] %vm104, %v157
    %v162 = vld [vmem:[%s0 + $0x2] sm:$0xff]
    %v163 = vld [vmem:[%s0 + $0xa] sm:$0x3f]
    %166 = vrot.lane.b32.xlu0 %v162, 48
    %v167 = vpop.permute.xlu0 %166
    %168 = vrot.lane.b32.xlu0 %v163, 48
    %v169 = vpop.permute.xlu0 %168
    %172 = vst.msk [vmem:[#allocation2 + $0x10] sm:$0xff] %vm117, %v167
    %vm173 = vcmask 521600
    %174 = vst.msk [vmem:[#allocation2 + $0x18] sm:$0x3f] %vm173, %v169
    %v175 = vld [vmem:[%s79 + $0x2] sm:$0xff]
    %v176 = vld [vmem:[%s79 + $0xa] sm:$0x3f]
    %179 = vrot.lane.b32.xlu0 %v175, 64
    %v180 = vpop.permute.xlu0 %179
    %181 = vrot.lane.b32.xlu0 %v176, 64
    %v182 = vpop.permute.xlu0 %181
    %185 = vst.msk [vmem:[#allocation2 + $0x10] sm:$0xff] %vm130, %v180
    %186 = vst.msk [vmem:[#allocation2 + $0x18] sm:$0x3f] %vm132, %v182
    %v187 = vld [vmem:[#allocation2] sm:$0xff]
    %v188 = vld [vmem:[#allocation2 + $0x8] sm:$0xff]
    %v189 = vld [vmem:[#allocation2 + $0x10] sm:$0xff]
    %v190 = vld [vmem:[#allocation2 + $0x18] sm:$0xff]
    %v191 = vpack.c.bf16 %v188, %v187
    %v192 = vpack.c.bf16 %v190, %v189
    %v193 = vld [vmem:[%s1] sm:$0xff]
    %v194 = vld [vmem:[%s1 + $0x8] sm:$0xff]
    %v195 = vld [vmem:[%s1 + $0x10] sm:$0xff]
    %v196 = vld [vmem:[%s1 + $0x18] sm:$0xff]
    %v197 = vld [vmem:[%s1 + $0x20] sm:$0xff]
    %v198 = vld [vmem:[%s1 + $0x28] sm:$0xff]
    %v199 = vld [vmem:[%s1 + $0x30] sm:$0xff]
    %v200 = vld [vmem:[%s1 + $0x38] sm:$0xff]
    %v201 = vld [vmem:[%s1 + $0x40] sm:$0xff]
    %v202 = vld [vmem:[%s1 + $0x48] sm:$0xff]
    %v213 = vunpack.c.l.b16 %v193
    %v214 = vunpack.c.h.b16 %v193
    %v215 = vunpack.c.l.b16 %v194
    %v216 = vunpack.c.h.b16 %v194
    %v217 = vunpack.c.l.b16 %v195
    %v218 = vunpack.c.h.b16 %v195
    %v219 = vunpack.c.l.b16 %v196
    %v220 = vunpack.c.h.b16 %v196
    %v221 = vunpack.c.l.b16 %v197
    %v222 = vunpack.c.h.b16 %v197
    %v223 = vunpack.c.l.b16 %v198
    %v224 = vunpack.c.h.b16 %v198
    %v225 = vunpack.c.l.b16 %v199
    %v226 = vunpack.c.h.b16 %v199
    %v227 = vunpack.c.l.b16 %v200
    %v228 = vunpack.c.h.b16 %v200
    %v229 = vunpack.c.l.b16 %v201
    %v230 = vunpack.c.h.b16 %v201
    %v231 = vunpack.c.l.b16 %v202
    %v232 = vunpack.c.h.b16 %v202
    %v233 = vpack.c.b16 %v215, %v213
    %v234 = vpack.c.b16 %v216, %v214
    %v235 = vpack.c.b16 %v219, %v217
    %v236 = vpack.c.b16 %v220, %v218
    %v237 = vpack.c.b16 %v223, %v221
    %v238 = vpack.c.b16 %v224, %v222
    %v239 = vpack.c.b16 %v227, %v225
    %v240 = vpack.c.b16 %v228, %v226
    %v241 = vpack.c.b16 %v231, %v229
    %v242 = vpack.c.b16 %v232, %v230
    %v254 = vsel %vm68, %v191, 0
    %v257 = vsel %vm68, %v192, 0
    %259 = vmatpush.bf16.msra.mxu0 0
    %260 = vmatpush.bf16.msra.mxu0 0
    %261 = vmatpush.bf16.msra.mxu0 0
    %262 = vmatpush.bf16.msra.mxu0 %v241
    %263 = vmatpush.bf16.msra.mxu0 %v239
    %264 = vmatpush.bf16.msra.mxu0 %v237
    %265 = vmatpush.bf16.msra.mxu0 %v235
    %266 = vmatpush.bf16.msra.mxu0 %v233
    %267 = vmatmul.bf16.gmra.mxu0 %v254
    %v268 = vpop.f32.mrf.mxu0
    %v269 = vadd.f32 0.0, %v268
    %v270 = vpop.f32.mrf.mxu0
    %v271 = vadd.f32 0.0, %v270
    %272 = vmatmul.bf16.gmra.mxu0 %v257
    %v273 = vpop.f32.mrf.mxu0
    %v274 = vadd.f32 0.0, %v273
    %v275 = vpop.f32.mrf.mxu0
    %v276 = vadd.f32 0.0, %v275
    %277 = vdwg.mxu0
    %278 = vmatpush.bf16.msra.mxu0 0
    %279 = vmatpush.bf16.msra.mxu0 0
    %280 = vmatpush.bf16.msra.mxu0 0
    %281 = vmatpush.bf16.msra.mxu0 %v242
    %282 = vmatpush.bf16.msra.mxu0 %v240
    %283 = vmatpush.bf16.msra.mxu0 %v238
    %284 = vmatpush.bf16.msra.mxu0 %v236
    %285 = vmatpush.bf16.msra.mxu0 %v234
    %286 = vmatmul.bf16.gmra.mxu0 %v254
    %v287 = vpop.f32.mrf.mxu0
    %v288 = vadd.f32 0.0, %v287
    %v289 = vpop.f32.mrf.mxu0
    %v290 = vadd.f32 0.0, %v289
    %291 = vmatmul.bf16.gmra.mxu0 %v257
    %v292 = vpop.f32.mrf.mxu0
    %v293 = vadd.f32 0.0, %v292
    %v294 = vpop.f32.mrf.mxu0
    %v295 = vadd.f32 0.0, %v294
    %296 = vdwg.mxu0
    %v297 = vmax.f32 %v269, 0.0
    %v298 = vmax.f32 %v288, 0.0
    %v299 = vmax.f32 %v271, 0.0
    %v300 = vmax.f32 %v290, 0.0
    %v301 = vmax.f32 %v274, 0.0
    %v302 = vmax.f32 %v293, 0.0
    %v303 = vmax.f32 %v276, 0.0
    %v304 = vmax.f32 %v295, 0.0
    %v305 = vmax.f32 %v297, %v301
    %v306 = vmax.f32 %v298, %v302
    %v307 = vmax.f32 %v299, %v303
    %v308 = vmax.f32 %v300, %v304
    %v309 = vmax.f32 %v305, %v306
    %v310 = vmax.f32 %v307, %v308
    %311 = vst [vmem:[#allocation3] sm:$0x3] 0.0
    %312 = vst [vmem:[#allocation3 + $0x12] sm:$0x3] 0.0
    %313 = vst [vmem:[#allocation3 + $0x2] sm:$0xff] %v309
    %314 = vst [vmem:[#allocation3 + $0xa] sm:$0xff] %v310
    %v315 = vld [vmem:[#allocation3] sm:$0xff]
    %v316 = vld [vmem:[#allocation3 + $0x8] sm:$0xff]
    %v317 = vld [vmem:[#allocation3 + $0x2] sm:$0xff]
    %v318 = vld [vmem:[#allocation3 + $0xa] sm:$0xff]
    %v319 = vld [vmem:[#allocation3 + $0x4] sm:$0xff]
    %v320 = vld [vmem:[#allocation3 + $0xc] sm:$0xff]
    %v321 = vpack.c.bf16 %v316, %v315
    %v322 = vpack.c.bf16 %v318, %v317
    %v323 = vpack.c.bf16 %v320, %v319
    %v324 = vld [vmem:[#allocation5] sm:$0xff]
    %v325 = vld [vmem:[#allocation5 + $0x8] sm:$0xff]
    %v326 = vld [vmem:[#allocation5 + $0x10] sm:$0xff]
    %v327 = vld [vmem:[#allocation5 + $0x18] sm:$0xff]
    %v328 = vld [vmem:[#allocation5 + $0x20] sm:$0xff]
    %v329 = vld [vmem:[#allocation5 + $0x28] sm:$0xff]
    %v330 = vld [vmem:[#allocation5 + $0x30] sm:$0xff]
    %v331 = vld [vmem:[#allocation5 + $0x38] sm:$0xff]
    %v332 = vld [vmem:[#allocation5 + $0x40] sm:$0xff]
    %v333 = vld [vmem:[#allocation5 + $0x48] sm:$0xff]
    %v334 = vld [vmem:[#allocation5 + $0x50] sm:$0xff]
    %v335 = vld [vmem:[#allocation5 + $0x58] sm:$0xff]
    %v336 = vld [vmem:[#allocation5 + $0x60] sm:$0xff]
    %v337 = vld [vmem:[#allocation5 + $0x68] sm:$0xff]
    %v338 = vld [vmem:[#allocation5 + $0x70] sm:$0xff]
    %v339 = vld [vmem:[#allocation5 + $0x78] sm:$0xff]
    %v340 = vld [vmem:[#allocation5 + $0x80] sm:$0xff]
    %v341 = vld [vmem:[#allocation5 + $0x88] sm:$0xff]
    %v342 = vld [vmem:[#allocation5 + $0x90] sm:$0xff]
    %v343 = vld [vmem:[#allocation5 + $0x98] sm:$0xff]
    %v344 = vld [vmem:[#allocation5 + $0xa0] sm:$0xff]
    %v345 = vld [vmem:[#allocation5 + $0xa8] sm:$0xff]
    %v346 = vld [vmem:[#allocation5 + $0xb0] sm:$0xff]
    %v347 = vld [vmem:[#allocation5 + $0xb8] sm:$0xff]
    %v348 = vld [vmem:[#allocation5 + $0xc0] sm:$0xff]
    %v349 = vld [vmem:[#allocation5 + $0xc8] sm:$0xff]
    %v350 = vld [vmem:[#allocation5 + $0xd0] sm:$0xff]
    %v351 = vld [vmem:[#allocation5 + $0xd8] sm:$0xff]
    %v352 = vld [vmem:[#allocation5 + $0xe0] sm:$0xff]
    %v353 = vld [vmem:[#allocation5 + $0xe8] sm:$0xff]
    %v354 = vld [vmem:[#allocation5 + $0xf0] sm:$0xff]
    %v355 = vld [vmem:[#allocation5 + $0xf8] sm:$0xff]
    %v356 = vld [vmem:[#allocation5 + $0x100] sm:$0xff]
    %v357 = vld [vmem:[#allocation5 + $0x108] sm:$0xff]
    %v358 = vld [vmem:[#allocation5 + $0x110] sm:$0xff]
    %v359 = vld [vmem:[#allocation5 + $0x118] sm:$0xff]
    %v360 = vld [vmem:[#allocation5 + $0x120] sm:$0xff]
    %v361 = vld [vmem:[#allocation5 + $0x128] sm:$0xff]
    %v362 = vld [vmem:[#allocation5 + $0x130] sm:$0xff]
    %v363 = vld [vmem:[#allocation5 + $0x138] sm:$0xff]
    %v364 = vld [vmem:[#allocation5 + $0x140] sm:$0xff]
    %v365 = vld [vmem:[#allocation5 + $0x148] sm:$0xff]
    %v366 = vld [vmem:[#allocation5 + $0x150] sm:$0xff]
    %v367 = vld [vmem:[#allocation5 + $0x158] sm:$0xff]
    %v368 = vld [vmem:[#allocation5 + $0x160] sm:$0xff]
    %v369 = vld [vmem:[#allocation5 + $0x168] sm:$0xff]
    %v370 = vld [vmem:[#allocation5 + $0x170] sm:$0xff]
    %v371 = vld [vmem:[#allocation5 + $0x178] sm:$0xff]
    %v420 = vunpack.c.l.b16 %v324
    %v421 = vunpack.c.h.b16 %v324
    %v422 = vunpack.c.l.b16 %v325
    %v423 = vunpack.c.h.b16 %v325
    %v424 = vunpack.c.l.b16 %v326
    %v425 = vunpack.c.h.b16 %v326
    %v426 = vunpack.c.l.b16 %v327
    %v427 = vunpack.c.h.b16 %v327
    %v428 = vunpack.c.l.b16 %v328
    %v429 = vunpack.c.h.b16 %v328
    %v430 = vunpack.c.l.b16 %v329
    %v431 = vunpack.c.h.b16 %v329
    %v432 = vunpack.c.l.b16 %v330
    %v433 = vunpack.c.h.b16 %v330
    %v434 = vunpack.c.l.b16 %v331
    %v435 = vunpack.c.h.b16 %v331
    %v436 = vunpack.c.l.b16 %v332
    %v437 = vunpack.c.h.b16 %v332
    %v438 = vunpack.c.l.b16 %v333
    %v439 = vunpack.c.h.b16 %v333
    %v440 = vunpack.c.l.b16 %v334
    %v441 = vunpack.c.h.b16 %v334
    %v442 = vunpack.c.l.b16 %v335
    %v443 = vunpack.c.h.b16 %v335
    %v444 = vunpack.c.l.b16 %v336
    %v445 = vunpack.c.h.b16 %v336
    %v446 = vunpack.c.l.b16 %v337
    %v447 = vunpack.c.h.b16 %v337
    %v448 = vunpack.c.l.b16 %v338
    %v449 = vunpack.c.h.b16 %v338
    %v450 = vunpack.c.l.b16 %v339
    %v451 = vunpack.c.h.b16 %v339
    %v452 = vunpack.c.l.b16 %v340
    %v453 = vunpack.c.h.b16 %v340
    %v454 = vunpack.c.l.b16 %v341
    %v455 = vunpack.c.h.b16 %v341
    %v456 = vunpack.c.l.b16 %v342
    %v457 = vunpack.c.h.b16 %v342
    %v458 = vunpack.c.l.b16 %v343
    %v459 = vunpack.c.h.b16 %v343
    %v460 = vunpack.c.l.b16 %v344
    %v461 = vunpack.c.h.b16 %v344
    %v462 = vunpack.c.l.b16 %v345
    %v463 = vunpack.c.h.b16 %v345
    %v464 = vunpack.c.l.b16 %v346
    %v465 = vunpack.c.h.b16 %v346
    %v466 = vunpack.c.l.b16 %v347
    %v467 = vunpack.c.h.b16 %v347
    %v468 = vunpack.c.l.b16 %v348
    %v469 = vunpack.c.h.b16 %v348
    %v470 = vunpack.c.l.b16 %v349
    %v471 = vunpack.c.h.b16 %v349
    %v472 = vunpack.c.l.b16 %v350
    %v473 = vunpack.c.h.b16 %v350
    %v474 = vunpack.c.l.b16 %v351
    %v475 = vunpack.c.h.b16 %v351
    %v476 = vunpack.c.l.b16 %v352
    %v477 = vunpack.c.h.b16 %v352
    %v478 = vunpack.c.l.b16 %v353
    %v479 = vunpack.c.h.b16 %v353
    %v480 = vunpack.c.l.b16 %v354
    %v481 = vunpack.c.h.b16 %v354
    %v482 = vunpack.c.l.b16 %v355
    %v483 = vunpack.c.h.b16 %v355
    %v484 = vunpack.c.l.b16 %v356
    %v485 = vunpack.c.h.b16 %v356
    %v486 = vunpack.c.l.b16 %v357
    %v487 = vunpack.c.h.b16 %v357
    %v488 = vunpack.c.l.b16 %v358
    %v489 = vunpack.c.h.b16 %v358
    %v490 = vunpack.c.l.b16 %v359
    %v491 = vunpack.c.h.b16 %v359
    %v492 = vunpack.c.l.b16 %v360
    %v493 = vunpack.c.h.b16 %v360
    %v494 = vunpack.c.l.b16 %v361
    %v495 = vunpack.c.h.b16 %v361
    %v496 = vunpack.c.l.b16 %v362
    %v497 = vunpack.c.h.b16 %v362
    %v498 = vunpack.c.l.b16 %v363
    %v499 = vunpack.c.h.b16 %v363
    %v500 = vunpack.c.l.b16 %v364
    %v501 = vunpack.c.h.b16 %v364
    %v502 = vunpack.c.l.b16 %v365
    %v503 = vunpack.c.h.b16 %v365
    %v504 = vunpack.c.l.b16 %v366
    %v505 = vunpack.c.h.b16 %v366
    %v506 = vunpack.c.l.b16 %v367
    %v507 = vunpack.c.h.b16 %v367
    %v508 = vunpack.c.l.b16 %v368
    %v509 = vunpack.c.h.b16 %v368
    %v510 = vunpack.c.l.b16 %v369
    %v511 = vunpack.c.h.b16 %v369
    %v512 = vunpack.c.l.b16 %v370
    %v513 = vunpack.c.h.b16 %v370
    %v514 = vunpack.c.l.b16 %v371
    %v515 = vunpack.c.h.b16 %v371
    %v516 = vpack.c.b16 %v422, %v420
    %v517 = vpack.c.b16 %v423, %v421
    %v518 = vpack.c.b16 %v426, %v424
    %v519 = vpack.c.b16 %v427, %v425
    %v520 = vpack.c.b16 %v430, %v428
    %v521 = vpack.c.b16 %v431, %v429
    %v522 = vpack.c.b16 %v434, %v432
    %v523 = vpack.c.b16 %v435, %v433
    %v524 = vpack.c.b16 %v438, %v436
    %v525 = vpack.c.b16 %v439, %v437
    %v526 = vpack.c.b16 %v442, %v440
    %v527 = vpack.c.b16 %v443, %v441
    %v528 = vpack.c.b16 %v446, %v444
    %v529 = vpack.c.b16 %v447, %v445
    %v530 = vpack.c.b16 %v450, %v448
    %v531 = vpack.c.b16 %v451, %v449
    %v532 = vpack.c.b16 %v454, %v452
    %v533 = vpack.c.b16 %v455, %v453
    %v534 = vpack.c.b16 %v458, %v456
    %v535 = vpack.c.b16 %v459, %v457
    %v536 = vpack.c.b16 %v462, %v460
    %v537 = vpack.c.b16 %v463, %v461
    %v538 = vpack.c.b16 %v466, %v464
    %v539 = vpack.c.b16 %v467, %v465
    %v540 = vpack.c.b16 %v470, %v468
    %v541 = vpack.c.b16 %v471, %v469
    %v542 = vpack.c.b16 %v474, %v472
    %v543 = vpack.c.b16 %v475, %v473
    %v544 = vpack.c.b16 %v478, %v476
    %v545 = vpack.c.b16 %v479, %v477
    %v546 = vpack.c.b16 %v482, %v480
    %v547 = vpack.c.b16 %v483, %v481
    %v548 = vpack.c.b16 %v486, %v484
    %v549 = vpack.c.b16 %v487, %v485
    %v550 = vpack.c.b16 %v490, %v488
    %v551 = vpack.c.b16 %v491, %v489
    %v552 = vpack.c.b16 %v494, %v492
    %v553 = vpack.c.b16 %v495, %v493
    %v554 = vpack.c.b16 %v498, %v496
    %v555 = vpack.c.b16 %v499, %v497
    %v556 = vpack.c.b16 %v502, %v500
    %v557 = vpack.c.b16 %v503, %v501
    %v558 = vpack.c.b16 %v506, %v504
    %v559 = vpack.c.b16 %v507, %v505
    %v560 = vpack.c.b16 %v510, %v508
    %v561 = vpack.c.b16 %v511, %v509
    %v562 = vpack.c.b16 %v514, %v512
    %v563 = vpack.c.b16 %v515, %v513
    %612 = vmatpush.bf16.msra.mxu0 %v530
    %613 = vmatpush.bf16.msra.mxu0 %v528
    %614 = vmatpush.bf16.msra.mxu0 %v526
    %615 = vmatpush.bf16.msra.mxu0 %v524
    %616 = vmatpush.bf16.msra.mxu0 %v522
    %617 = vmatpush.bf16.msra.mxu0 %v520
    %618 = vmatpush.bf16.msra.mxu0 %v518
    %619 = vmatpush.bf16.msra.mxu0 %v516
    %620 = vmatmul.bf16.gmra.mxu0 %v321
    %v621 = vpop.f32.mrf.mxu0
    %v622 = vadd.f32 0.0, %v621
    %v623 = vpop.f32.mrf.mxu0
    %v624 = vadd.f32 0.0, %v623
    %625 = vdwg.mxu0
    %626 = vmatpush.bf16.msra.mxu0 %v546
    %627 = vmatpush.bf16.msra.mxu0 %v544
    %628 = vmatpush.bf16.msra.mxu0 %v542
    %629 = vmatpush.bf16.msra.mxu0 %v540
    %630 = vmatpush.bf16.msra.mxu0 %v538
    %631 = vmatpush.bf16.msra.mxu0 %v536
    %632 = vmatpush.bf16.msra.mxu0 %v534
    %633 = vmatpush.bf16.msra.mxu0 %v532
    %634 = vmatmul.bf16.gmra.mxu0 %v322
    %v635 = vpop.f32.mrf.mxu0
    %v636 = vadd.f32 %v622, %v635
    %v637 = vpop.f32.mrf.mxu0
    %v638 = vadd.f32 %v624, %v637
    %639 = vdwg.mxu0
    %640 = vmatpush.bf16.msra.mxu0 %v562
    %641 = vmatpush.bf16.msra.mxu0 %v560
    %642 = vmatpush.bf16.msra.mxu0 %v558
    %643 = vmatpush.bf16.msra.mxu0 %v556
    %644 = vmatpush.bf16.msra.mxu0 %v554
    %645 = vmatpush.bf16.msra.mxu0 %v552
    %646 = vmatpush.bf16.msra.mxu0 %v550
    %647 = vmatpush.bf16.msra.mxu0 %v548
    %648 = vmatmul.bf16.gmra.mxu0 %v323
    %v649 = vpop.f32.mrf.mxu0
    %v650 = vadd.f32 %v636, %v649
    %v651 = vpop.f32.mrf.mxu0
    %v652 = vadd.f32 %v638, %v651
    %653 = vdwg.mxu0
    %654 = vmatpush.bf16.msra.mxu0 %v531
    %655 = vmatpush.bf16.msra.mxu0 %v529
    %656 = vmatpush.bf16.msra.mxu0 %v527
    %657 = vmatpush.bf16.msra.mxu0 %v525
    %658 = vmatpush.bf16.msra.mxu0 %v523
    %659 = vmatpush.bf16.msra.mxu0 %v521
    %660 = vmatpush.bf16.msra.mxu0 %v519
    %661 = vmatpush.bf16.msra.mxu0 %v517
    %662 = vmatmul.bf16.gmra.mxu0 %v321
    %v663 = vpop.f32.mrf.mxu0
    %v664 = vadd.f32 0.0, %v663
    %v665 = vpop.f32.mrf.mxu0
    %v666 = vadd.f32 0.0, %v665
    %667 = vdwg.mxu0
    %668 = vmatpush.bf16.msra.mxu0 %v547
    %669 = vmatpush.bf16.msra.mxu0 %v545
    %670 = vmatpush.bf16.msra.mxu0 %v543
    %671 = vmatpush.bf16.msra.mxu0 %v541
    %672 = vmatpush.bf16.msra.mxu0 %v539
    %673 = vmatpush.bf16.msra.mxu0 %v537
    %674 = vmatpush.bf16.msra.mxu0 %v535
    %675 = vmatpush.bf16.msra.mxu0 %v533
    %676 = vmatmul.bf16.gmra.mxu0 %v322
    %v677 = vpop.f32.mrf.mxu0
    %v678 = vadd.f32 %v664, %v677
    %v679 = vpop.f32.mrf.mxu0
    %v680 = vadd.f32 %v666, %v679
    %681 = vdwg.mxu0
    %682 = vmatpush.bf16.msra.mxu0 %v563
    %683 = vmatpush.bf16.msra.mxu0 %v561
    %684 = vmatpush.bf16.msra.mxu0 %v559
    %685 = vmatpush.bf16.msra.mxu0 %v557
    %686 = vmatpush.bf16.msra.mxu0 %v555
    %687 = vmatpush.bf16.msra.mxu0 %v553
    %688 = vmatpush.bf16.msra.mxu0 %v551
    %689 = vmatpush.bf16.msra.mxu0 %v549
    %690 = vmatmul.bf16.gmra.mxu0 %v323
    %v691 = vpop.f32.mrf.mxu0
    %v692 = vadd.f32 %v678, %v691
    %v693 = vpop.f32.mrf.mxu0
    %v694 = vadd.f32 %v680, %v693
    %695 = vdwg.mxu0
    %696 = vst [vmem:[#allocation4] sm:$0x3] 0.0
    %697 = vst [vmem:[#allocation4 + $0x8] sm:$0x3] 0.0
    %698 = vst [vmem:[#allocation4 + $0x20] sm:$0xc] 0.0
    %699 = vst [vmem:[#allocation4 + $0x28] sm:$0xc] 0.0
    %vm704 = vcmask 1041408
    %v705 = vrot.slane %v650, 6
    %v706 = vrot.slane %v692, 6
    %v707 = vrot.slane %v652, 6
    %v708 = vsel %vm704, %v705, %v707
    %v709 = vrot.slane %v694, 6
    %v710 = vsel %vm704, %v706, %v709
    %717 = vst [vmem:[#allocation4] sm:$0xfc] %v705
    %718 = vst [vmem:[#allocation4 + $0x8] sm:$0xfc] %v706
    %719 = vst [vmem:[#allocation4 + $0x10] sm:$0xff] %v708
    %720 = vst [vmem:[#allocation4 + $0x18] sm:$0xff] %v710
    %721 = vst [vmem:[#allocation4 + $0x20] sm:$0x3] %v707
    %722 = vst [vmem:[#allocation4 + $0x28] sm:$0x3] %v709
    %v723 = vld [vmem:[#allocation4] sm:$0xff]
    %v724 = vld [vmem:[#allocation4 + $0x8] sm:$0xff]
    %v725 = vld [vmem:[#allocation4 + $0x10] sm:$0xff]
    %v726 = vld [vmem:[#allocation4 + $0x18] sm:$0xff]
    %v727 = vld [vmem:[#allocation4] sm:$0xfc]
    %v728 = vld [vmem:[#allocation4 + $0x8] sm:$0xfc]
    %v729 = vld [vmem:[#allocation4 + $0x20] sm:$0x3]
    %v730 = vld [vmem:[#allocation4 + $0x28] sm:$0x3]
    %v731 = vld [vmem:[#allocation4] sm:$0xf0]
    %v732 = vld [vmem:[#allocation4 + $0x8] sm:$0xf0]
    %v733 = vld [vmem:[#allocation4 + $0x20] sm:$0xf]
    %v734 = vld [vmem:[#allocation4 + $0x28] sm:$0xf]
    %vm741 = vcmask 1045504
    %v742 = vrot.slane %v727, 2
    %v743 = vrot.slane %v725, 2
    %v744 = vsel %vm741, %v742, %v743
    %v745 = vrot.slane %v728, 2
    %v746 = vrot.slane %v726, 2
    %v747 = vsel %vm741, %v745, %v746
    %v748 = vrot.slane %v729, 2
    %v749 = vsel %vm741, %v743, %v748
    %v750 = vrot.slane %v730, 2
    %v751 = vsel %vm741, %v746, %v750
    %vm760 = vcmask 1043456
    %v761 = vrot.slane %v731, 4
    %v762 = vrot.slane %v725, 4
    %v763 = vsel %vm760, %v761, %v762
    %v764 = vrot.slane %v732, 4
    %v765 = vrot.slane %v726, 4
    %v766 = vsel %vm760, %v764, %v765
    %v767 = vrot.slane %v733, 4
    %v768 = vsel %vm760, %v762, %v767
    %v769 = vrot.slane %v734, 4
    %v770 = vsel %vm760, %v765, %v769
    %v775 = vpack.c.bf16 %v725, %v723
    %v776 = vpack.c.bf16 %v726, %v724
    %v777 = vpack.c.bf16 %v749, %v744
    %v778 = vpack.c.bf16 %v751, %v747
    %v779 = vpack.c.bf16 %v768, %v763
    %v780 = vpack.c.bf16 %v770, %v766
    %v781 = vld [vmem:[#allocation7] sm:$0xff]
    %v782 = vld [vmem:[#allocation7 + $0x8] sm:$0xff]
    %v783 = vld [vmem:[#allocation7 + $0x10] sm:$0xff]
    %v784 = vld [vmem:[#allocation7 + $0x18] sm:$0xff]
    %v785 = vld [vmem:[#allocation7 + $0x20] sm:$0xff]
    %v786 = vld [vmem:[#allocation7 + $0x28] sm:$0xff]
    %v787 = vld [vmem:[#allocation7 + $0x30] sm:$0xff]
    %v788 = vld [vmem:[#allocation7 + $0x38] sm:$0xff]
    %v789 = vld [vmem:[#allocation7 + $0x40] sm:$0xff]
    %v790 = vld [vmem:[#allocation7 + $0x48] sm:$0xff]
    %v791 = vld [vmem:[#allocation7 + $0x50] sm:$0xff]
    %v792 = vld [vmem:[#allocation7 + $0x58] sm:$0xff]
    %v793 = vld [vmem:[#allocation7 + $0x60] sm:$0xff]
    %v794 = vld [vmem:[#allocation7 + $0x68] sm:$0xff]
    %v795 = vld [vmem:[#allocation7 + $0x70] sm:$0xff]
    %v796 = vld [vmem:[#allocation7 + $0x78] sm:$0xff]
    %v797 = vld [vmem:[#allocation7 + $0x80] sm:$0xff]
    %v798 = vld [vmem:[#allocation7 + $0x88] sm:$0xff]
    %v799 = vld [vmem:[#allocation7 + $0x90] sm:$0xff]
    %v800 = vld [vmem:[#allocation7 + $0x98] sm:$0xff]
    %v801 = vld [vmem:[#allocation7 + $0xa0] sm:$0xff]
    %v802 = vld [vmem:[#allocation7 + $0xa8] sm:$0xff]
    %v803 = vld [vmem:[#allocation7 + $0xb0] sm:$0xff]
    %v804 = vld [vmem:[#allocation7 + $0xb8] sm:$0xff]
    %v805 = vld [vmem:[#allocation7 + $0xc0] sm:$0xff]
    %v806 = vld [vmem:[#allocation7 + $0xc8] sm:$0xff]
    %v807 = vld [vmem:[#allocation7 + $0xd0] sm:$0xff]
    %v808 = vld [vmem:[#allocation7 + $0xd8] sm:$0xff]
    %v809 = vld [vmem:[#allocation7 + $0xe0] sm:$0xff]
    %v810 = vld [vmem:[#allocation7 + $0xe8] sm:$0xff]
    %v811 = vld [vmem:[#allocation7 + $0xf0] sm:$0xff]
    %v812 = vld [vmem:[#allocation7 + $0xf8] sm:$0xff]
    %v813 = vld [vmem:[#allocation7 + $0x100] sm:$0xff]
    %v814 = vld [vmem:[#allocation7 + $0x108] sm:$0xff]
    %v815 = vld [vmem:[#allocation7 + $0x110] sm:$0xff]
    %v816 = vld [vmem:[#allocation7 + $0x118] sm:$0xff]
    %v817 = vld [vmem:[#allocation7 + $0x120] sm:$0xff]
    %v818 = vld [vmem:[#allocation7 + $0x128] sm:$0xff]
    %v819 = vld [vmem:[#allocation7 + $0x130] sm:$0xff]
    %v820 = vld [vmem:[#allocation7 + $0x138] sm:$0xff]
    %v821 = vld [vmem:[#allocation7 + $0x140] sm:$0xff]
    %v822 = vld [vmem:[#allocation7 + $0x148] sm:$0xff]
    %v823 = vld [vmem:[#allocation7 + $0x150] sm:$0xff]
    %v824 = vld [vmem:[#allocation7 + $0x158] sm:$0xff]
    %v825 = vld [vmem:[#allocation7 + $0x160] sm:$0xff]
    %v826 = vld [vmem:[#allocation7 + $0x168] sm:$0xff]
    %v827 = vld [vmem:[#allocation7 + $0x170] sm:$0xff]
    %v828 = vld [vmem:[#allocation7 + $0x178] sm:$0xff]
    %v829 = vld [vmem:[#allocation7 + $0x180] sm:$0xff]
    %v830 = vld [vmem:[#allocation7 + $0x188] sm:$0xff]
    %v831 = vld [vmem:[#allocation7 + $0x190] sm:$0xff]
    %v832 = vld [vmem:[#allocation7 + $0x198] sm:$0xff]
    %v833 = vld [vmem:[#allocation7 + $0x1a0] sm:$0xff]
    %v834 = vld [vmem:[#allocation7 + $0x1a8] sm:$0xff]
    %v835 = vld [vmem:[#allocation7 + $0x1b0] sm:$0xff]
    %v836 = vld [vmem:[#allocation7 + $0x1b8] sm:$0xff]
    %v837 = vld [vmem:[#allocation7 + $0x1c0] sm:$0xff]
    %v838 = vld [vmem:[#allocation7 + $0x1c8] sm:$0xff]
    %v839 = vld [vmem:[#allocation7 + $0x1d0] sm:$0xff]
    %v840 = vld [vmem:[#allocation7 + $0x1d8] sm:$0xff]
    %v841 = vld [vmem:[#allocation7 + $0x1e0] sm:$0xff]
    %v842 = vld [vmem:[#allocation7 + $0x1e8] sm:$0xff]
    %v843 = vld [vmem:[#allocation7 + $0x1f0] sm:$0xff]
    %v844 = vld [vmem:[#allocation7 + $0x1f8] sm:$0xff]
    %v845 = vld [vmem:[#allocation7 + $0x200] sm:$0xff]
    %v846 = vld [vmem:[#allocation7 + $0x208] sm:$0xff]
    %v847 = vld [vmem:[#allocation7 + $0x210] sm:$0xff]
    %v848 = vld [vmem:[#allocation7 + $0x218] sm:$0xff]
    %v849 = vld [vmem:[#allocation7 + $0x220] sm:$0xff]
    %v850 = vld [vmem:[#allocation7 + $0x228] sm:$0xff]
    %v851 = vld [vmem:[#allocation7 + $0x230] sm:$0xff]
    %v852 = vld [vmem:[#allocation7 + $0x238] sm:$0xff]
    %v853 = vld [vmem:[#allocation7 + $0x240] sm:$0xff]
    %v854 = vld [vmem:[#allocation7 + $0x248] sm:$0xff]
    %v855 = vld [vmem:[#allocation7 + $0x250] sm:$0xff]
    %v856 = vld [vmem:[#allocation7 + $0x258] sm:$0xff]
    %v857 = vld [vmem:[#allocation7 + $0x260] sm:$0xff]
    %v858 = vld [vmem:[#allocation7 + $0x268] sm:$0xff]
    %v859 = vld [vmem:[#allocation7 + $0x270] sm:$0xff]
    %v860 = vld [vmem:[#allocation7 + $0x278] sm:$0xff]
    %v861 = vld [vmem:[#allocation7 + $0x280] sm:$0xff]
    %v862 = vld [vmem:[#allocation7 + $0x288] sm:$0xff]
    %v863 = vld [vmem:[#allocation7 + $0x290] sm:$0xff]
    %v864 = vld [vmem:[#allocation7 + $0x298] sm:$0xff]
    %v865 = vld [vmem:[#allocation7 + $0x2a0] sm:$0xff]
    %v866 = vld [vmem:[#allocation7 + $0x2a8] sm:$0xff]
    %v867 = vld [vmem:[#allocation7 + $0x2b0] sm:$0xff]
    %v868 = vld [vmem:[#allocation7 + $0x2b8] sm:$0xff]
    %v869 = vld [vmem:[#allocation7 + $0x2c0] sm:$0xff]
    %v870 = vld [vmem:[#allocation7 + $0x2c8] sm:$0xff]
    %v871 = vld [vmem:[#allocation7 + $0x2d0] sm:$0xff]
    %v872 = vld [vmem:[#allocation7 + $0x2d8] sm:$0xff]
    %v873 = vld [vmem:[#allocation7 + $0x2e0] sm:$0xff]
    %v874 = vld [vmem:[#allocation7 + $0x2e8] sm:$0xff]
    %v875 = vld [vmem:[#allocation7 + $0x2f0] sm:$0xff]
    %v876 = vld [vmem:[#allocation7 + $0x2f8] sm:$0xff]
    %v973 = vunpack.c.l.b16 %v781
    %v974 = vunpack.c.h.b16 %v781
    %v975 = vunpack.c.l.b16 %v782
    %v976 = vunpack.c.h.b16 %v782
    %v977 = vunpack.c.l.b16 %v783
    %v978 = vunpack.c.h.b16 %v783
    %v979 = vunpack.c.l.b16 %v784
    %v980 = vunpack.c.h.b16 %v784
    %v981 = vunpack.c.l.b16 %v785
    %v982 = vunpack.c.h.b16 %v785
    %v983 = vunpack.c.l.b16 %v786
    %v984 = vunpack.c.h.b16 %v786
    %v985 = vunpack.c.l.b16 %v787
    %v986 = vunpack.c.h.b16 %v787
    %v987 = vunpack.c.l.b16 %v788
    %v988 = vunpack.c.h.b16 %v788
    %v989 = vunpack.c.l.b16 %v789
    %v990 = vunpack.c.h.b16 %v789
    %v991 = vunpack.c.l.b16 %v790
    %v992 = vunpack.c.h.b16 %v790
    %v993 = vunpack.c.l.b16 %v791
    %v994 = vunpack.c.h.b16 %v791
    %v995 = vunpack.c.l.b16 %v792
    %v996 = vunpack.c.h.b16 %v792
    %v997 = vunpack.c.l.b16 %v793
    %v998 = vunpack.c.h.b16 %v793
    %v999 = vunpack.c.l.b16 %v794
    %v1000 = vunpack.c.h.b16 %v794
    %v1001 = vunpack.c.l.b16 %v795
    %v1002 = vunpack.c.h.b16 %v795
    %v1003 = vunpack.c.l.b16 %v796
    %v1004 = vunpack.c.h.b16 %v796
    %v1005 = vunpack.c.l.b16 %v797
    %v1006 = vunpack.c.h.b16 %v797
    %v1007 = vunpack.c.l.b16 %v798
    %v1008 = vunpack.c.h.b16 %v798
    %v1009 = vunpack.c.l.b16 %v799
    %v1010 = vunpack.c.h.b16 %v799
    %v1011 = vunpack.c.l.b16 %v800
    %v1012 = vunpack.c.h.b16 %v800
    %v1013 = vunpack.c.l.b16 %v801
    %v1014 = vunpack.c.h.b16 %v801
    %v1015 = vunpack.c.l.b16 %v802
    %v1016 = vunpack.c.h.b16 %v802
    %v1017 = vunpack.c.l.b16 %v803
    %v1018 = vunpack.c.h.b16 %v803
    %v1019 = vunpack.c.l.b16 %v804
    %v1020 = vunpack.c.h.b16 %v804
    %v1021 = vunpack.c.l.b16 %v805
    %v1022 = vunpack.c.h.b16 %v805
    %v1023 = vunpack.c.l.b16 %v806
    %v1024 = vunpack.c.h.b16 %v806
    %v1025 = vunpack.c.l.b16 %v807
    %v1026 = vunpack.c.h.b16 %v807
    %v1027 = vunpack.c.l.b16 %v808
    %v1028 = vunpack.c.h.b16 %v808
    %v1029 = vunpack.c.l.b16 %v809
    %v1030 = vunpack.c.h.b16 %v809
    %v1031 = vunpack.c.l.b16 %v810
    %v1032 = vunpack.c.h.b16 %v810
    %v1033 = vunpack.c.l.b16 %v811
    %v1034 = vunpack.c.h.b16 %v811
    %v1035 = vunpack.c.l.b16 %v812
    %v1036 = vunpack.c.h.b16 %v812
    %v1037 = vunpack.c.l.b16 %v813
    %v1038 = vunpack.c.h.b16 %v813
    %v1039 = vunpack.c.l.b16 %v814
    %v1040 = vunpack.c.h.b16 %v814
    %v1041 = vunpack.c.l.b16 %v815
    %v1042 = vunpack.c.h.b16 %v815
    %v1043 = vunpack.c.l.b16 %v816
    %v1044 = vunpack.c.h.b16 %v816
    %v1045 = vunpack.c.l.b16 %v817
    %v1046 = vunpack.c.h.b16 %v817
    %v1047 = vunpack.c.l.b16 %v818
    %v1048 = vunpack.c.h.b16 %v818
    %v1049 = vunpack.c.l.b16 %v819
    %v1050 = vunpack.c.h.b16 %v819
    %v1051 = vunpack.c.l.b16 %v820
    %v1052 = vunpack.c.h.b16 %v820
    %v1053 = vunpack.c.l.b16 %v821
    %v1054 = vunpack.c.h.b16 %v821
    %v1055 = vunpack.c.l.b16 %v822
    %v1056 = vunpack.c.h.b16 %v822
    %v1057 = vunpack.c.l.b16 %v823
    %v1058 = vunpack.c.h.b16 %v823
    %v1059 = vunpack.c.l.b16 %v824
    %v1060 = vunpack.c.h.b16 %v824
    %v1061 = vunpack.c.l.b16 %v825
    %v1062 = vunpack.c.h.b16 %v825
    %v1063 = vunpack.c.l.b16 %v826
    %v1064 = vunpack.c.h.b16 %v826
    %v1065 = vunpack.c.l.b16 %v827
    %v1066 = vunpack.c.h.b16 %v827
    %v1067 = vunpack.c.l.b16 %v828
    %v1068 = vunpack.c.h.b16 %v828
    %v1069 = vunpack.c.l.b16 %v829
    %v1070 = vunpack.c.h.b16 %v829
    %v1071 = vunpack.c.l.b16 %v830
    %v1072 = vunpack.c.h.b16 %v830
    %v1073 = vunpack.c.l.b16 %v831
    %v1074 = vunpack.c.h.b16 %v831
    %v1075 = vunpack.c.l.b16 %v832
    %v1076 = vunpack.c.h.b16 %v832
    %v1077 = vunpack.c.l.b16 %v833
    %v1078 = vunpack.c.h.b16 %v833
    %v1079 = vunpack.c.l.b16 %v834
    %v1080 = vunpack.c.h.b16 %v834
    %v1081 = vunpack.c.l.b16 %v835
    %v1082 = vunpack.c.h.b16 %v835
    %v1083 = vunpack.c.l.b16 %v836
    %v1084 = vunpack.c.h.b16 %v836
    %v1085 = vunpack.c.l.b16 %v837
    %v1086 = vunpack.c.h.b16 %v837
    %v1087 = vunpack.c.l.b16 %v838
    %v1088 = vunpack.c.h.b16 %v838
    %v1089 = vunpack.c.l.b16 %v839
    %v1090 = vunpack.c.h.b16 %v839
    %v1091 = vunpack.c.l.b16 %v840
    %v1092 = vunpack.c.h.b16 %v840
    %v1093 = vunpack.c.l.b16 %v841
    %v1094 = vunpack.c.h.b16 %v841
    %v1095 = vunpack.c.l.b16 %v842
    %v1096 = vunpack.c.h.b16 %v842
    %v1097 = vunpack.c.l.b16 %v843
    %v1098 = vunpack.c.h.b16 %v843
    %v1099 = vunpack.c.l.b16 %v844
    %v1100 = vunpack.c.h.b16 %v844
    %v1101 = vunpack.c.l.b16 %v845
    %v1102 = vunpack.c.h.b16 %v845
    %v1103 = vunpack.c.l.b16 %v846
    %v1104 = vunpack.c.h.b16 %v846
    %v1105 = vunpack.c.l.b16 %v847
    %v1106 = vunpack.c.h.b16 %v847
    %v1107 = vunpack.c.l.b16 %v848
    %v1108 = vunpack.c.h.b16 %v848
    %v1109 = vunpack.c.l.b16 %v849
    %v1110 = vunpack.c.h.b16 %v849
    %v1111 = vunpack.c.l.b16 %v850
    %v1112 = vunpack.c.h.b16 %v850
    %v1113 = vunpack.c.l.b16 %v851
    %v1114 = vunpack.c.h.b16 %v851
    %v1115 = vunpack.c.l.b16 %v852
    %v1116 = vunpack.c.h.b16 %v852
    %v1117 = vunpack.c.l.b16 %v853
    %v1118 = vunpack.c.h.b16 %v853
    %v1119 = vunpack.c.l.b16 %v854
    %v1120 = vunpack.c.h.b16 %v854
    %v1121 = vunpack.c.l.b16 %v855
    %v1122 = vunpack.c.h.b16 %v855
    %v1123 = vunpack.c.l.b16 %v856
    %v1124 = vunpack.c.h.b16 %v856
    %v1125 = vunpack.c.l.b16 %v857
    %v1126 = vunpack.c.h.b16 %v857
    %v1127 = vunpack.c.l.b16 %v858
    %v1128 = vunpack.c.h.b16 %v858
    %v1129 = vunpack.c.l.b16 %v859
    %v1130 = vunpack.c.h.b16 %v859
    %v1131 = vunpack.c.l.b16 %v860
    %v1132 = vunpack.c.h.b16 %v860
    %v1133 = vunpack.c.l.b16 %v861
    %v1134 = vunpack.c.h.b16 %v861
    %v1135 = vunpack.c.l.b16 %v862
    %v1136 = vunpack.c.h.b16 %v862
    %v1137 = vunpack.c.l.b16 %v863
    %v1138 = vunpack.c.h.b16 %v863
    %v1139 = vunpack.c.l.b16 %v864
    %v1140 = vunpack.c.h.b16 %v864
    %v1141 = vunpack.c.l.b16 %v865
    %v1142 = vunpack.c.h.b16 %v865
    %v1143 = vunpack.c.l.b16 %v866
    %v1144 = vunpack.c.h.b16 %v866
    %v1145 = vunpack.c.l.b16 %v867
    %v1146 = vunpack.c.h.b16 %v867
    %v1147 = vunpack.c.l.b16 %v868
    %v1148 = vunpack.c.h.b16 %v868
    %v1149 = vunpack.c.l.b16 %v869
    %v1150 = vunpack.c.h.b16 %v869
    %v1151 = vunpack.c.l.b16 %v870
    %v1152 = vunpack.c.h.b16 %v870
    %v1153 = vunpack.c.l.b16 %v871
    %v1154 = vunpack.c.h.b16 %v871
    %v1155 = vunpack.c.l.b16 %v872
    %v1156 = vunpack.c.h.b16 %v872
    %v1157 = vunpack.c.l.b16 %v873
    %v1158 = vunpack.c.h.b16 %v873
    %v1159 = vunpack.c.l.b16 %v874
    %v1160 = vunpack.c.h.b16 %v874
    %v1161 = vunpack.c.l.b16 %v875
    %v1162 = vunpack.c.h.b16 %v875
    %v1163 = vunpack.c.l.b16 %v876
    %v1164 = vunpack.c.h.b16 %v876
    %v1165 = vpack.c.b16 %v975, %v973
    %v1166 = vpack.c.b16 %v976, %v974
    %v1167 = vpack.c.b16 %v979, %v977
    %v1168 = vpack.c.b16 %v980, %v978
    %v1169 = vpack.c.b16 %v983, %v981
    %v1170 = vpack.c.b16 %v984, %v982
    %v1171 = vpack.c.b16 %v987, %v985
    %v1172 = vpack.c.b16 %v988, %v986
    %v1173 = vpack.c.b16 %v991, %v989
    %v1174 = vpack.c.b16 %v992, %v990
    %v1175 = vpack.c.b16 %v995, %v993
    %v1176 = vpack.c.b16 %v996, %v994
    %v1177 = vpack.c.b16 %v999, %v997
    %v1178 = vpack.c.b16 %v1000, %v998
    %v1179 = vpack.c.b16 %v1003, %v1001
    %v1180 = vpack.c.b16 %v1004, %v1002
    %v1181 = vpack.c.b16 %v1007, %v1005
    %v1182 = vpack.c.b16 %v1008, %v1006
    %v1183 = vpack.c.b16 %v1011, %v1009
    %v1184 = vpack.c.b16 %v1012, %v1010
    %v1185 = vpack.c.b16 %v1015, %v1013
    %v1186 = vpack.c.b16 %v1016, %v1014
    %v1187 = vpack.c.b16 %v1019, %v1017
    %v1188 = vpack.c.b16 %v1020, %v1018
    %v1189 = vpack.c.b16 %v1023, %v1021
    %v1190 = vpack.c.b16 %v1024, %v1022
    %v1191 = vpack.c.b16 %v1027, %v1025
    %v1192 = vpack.c.b16 %v1028, %v1026
    %v1193 = vpack.c.b16 %v1031, %v1029
    %v1194 = vpack.c.b16 %v1032, %v1030
    %v1195 = vpack.c.b16 %v1035, %v1033
    %v1196 = vpack.c.b16 %v1036, %v1034
    %v1197 = vpack.c.b16 %v1039, %v1037
    %v1198 = vpack.c.b16 %v1040, %v1038
    %v1199 = vpack.c.b16 %v1043, %v1041
    %v1200 = vpack.c.b16 %v1044, %v1042
    %v1201 = vpack.c.b16 %v1047, %v1045
    %v1202 = vpack.c.b16 %v1048, %v1046
    %v1203 = vpack.c.b16 %v1051, %v1049
    %v1204 = vpack.c.b16 %v1052, %v1050
    %v1205 = vpack.c.b16 %v1055, %v1053
    %v1206 = vpack.c.b16 %v1056, %v1054
    %v1207 = vpack.c.b16 %v1059, %v1057
    %v1208 = vpack.c.b16 %v1060, %v1058
    %v1209 = vpack.c.b16 %v1063, %v1061
    %v1210 = vpack.c.b16 %v1064, %v1062
    %v1211 = vpack.c.b16 %v1067, %v1065
    %v1212 = vpack.c.b16 %v1068, %v1066
    %v1213 = vpack.c.b16 %v1071, %v1069
    %v1214 = vpack.c.b16 %v1072, %v1070
    %v1215 = vpack.c.b16 %v1075, %v1073
    %v1216 = vpack.c.b16 %v1076, %v1074
    %v1217 = vpack.c.b16 %v1079, %v1077
    %v1218 = vpack.c.b16 %v1080, %v1078
    %v1219 = vpack.c.b16 %v1083, %v1081
    %v1220 = vpack.c.b16 %v1084, %v1082
    %v1221 = vpack.c.b16 %v1087, %v1085
    %v1222 = vpack.c.b16 %v1088, %v1086
    %v1223 = vpack.c.b16 %v1091, %v1089
    %v1224 = vpack.c.b16 %v1092, %v1090
    %v1225 = vpack.c.b16 %v1095, %v1093
    %v1226 = vpack.c.b16 %v1096, %v1094
    %v1227 = vpack.c.b16 %v1099, %v1097
    %v1228 = vpack.c.b16 %v1100, %v1098
    %v1229 = vpack.c.b16 %v1103, %v1101
    %v1230 = vpack.c.b16 %v1104, %v1102
    %v1231 = vpack.c.b16 %v1107, %v1105
    %v1232 = vpack.c.b16 %v1108, %v1106
    %v1233 = vpack.c.b16 %v1111, %v1109
    %v1234 = vpack.c.b16 %v1112, %v1110
    %v1235 = vpack.c.b16 %v1115, %v1113
    %v1236 = vpack.c.b16 %v1116, %v1114
    %v1237 = vpack.c.b16 %v1119, %v1117
    %v1238 = vpack.c.b16 %v1120, %v1118
    %v1239 = vpack.c.b16 %v1123, %v1121
    %v1240 = vpack.c.b16 %v1124, %v1122
    %v1241 = vpack.c.b16 %v1127, %v1125
    %v1242 = vpack.c.b16 %v1128, %v1126
    %v1243 = vpack.c.b16 %v1131, %v1129
    %v1244 = vpack.c.b16 %v1132, %v1130
    %v1245 = vpack.c.b16 %v1135, %v1133
    %v1246 = vpack.c.b16 %v1136, %v1134
    %v1247 = vpack.c.b16 %v1139, %v1137
    %v1248 = vpack.c.b16 %v1140, %v1138
    %v1249 = vpack.c.b16 %v1143, %v1141
    %v1250 = vpack.c.b16 %v1144, %v1142
    %v1251 = vpack.c.b16 %v1147, %v1145
    %v1252 = vpack.c.b16 %v1148, %v1146
    %v1253 = vpack.c.b16 %v1151, %v1149
    %v1254 = vpack.c.b16 %v1152, %v1150
    %v1255 = vpack.c.b16 %v1155, %v1153
    %v1256 = vpack.c.b16 %v1156, %v1154
    %v1257 = vpack.c.b16 %v1159, %v1157
    %v1258 = vpack.c.b16 %v1160, %v1158
    %v1259 = vpack.c.b16 %v1163, %v1161
    %v1260 = vpack.c.b16 %v1164, %v1162
    %1357 = vmatpush.bf16.msra.mxu0 %v1179
    %1358 = vmatpush.bf16.msra.mxu0 %v1177
    %1359 = vmatpush.bf16.msra.mxu0 %v1175
    %1360 = vmatpush.bf16.msra.mxu0 %v1173
    %1361 = vmatpush.bf16.msra.mxu0 %v1171
    %1362 = vmatpush.bf16.msra.mxu0 %v1169
    %1363 = vmatpush.bf16.msra.mxu0 %v1167
    %1364 = vmatpush.bf16.msra.mxu0 %v1165
    %1365 = vmatmul.bf16.gmra.mxu0 %v775
    %v1366 = vpop.f32.mrf.mxu0
    %v1367 = vadd.f32 0.0, %v1366
    %v1368 = vpop.f32.mrf.mxu0
    %v1369 = vadd.f32 0.0, %v1368
    %1370 = vdwg.mxu0
    %1371 = vmatpush.bf16.msra.mxu0 %v1195
    %1372 = vmatpush.bf16.msra.mxu0 %v1193
    %1373 = vmatpush.bf16.msra.mxu0 %v1191
    %1374 = vmatpush.bf16.msra.mxu0 %v1189
    %1375 = vmatpush.bf16.msra.mxu0 %v1187
    %1376 = vmatpush.bf16.msra.mxu0 %v1185
    %1377 = vmatpush.bf16.msra.mxu0 %v1183
    %1378 = vmatpush.bf16.msra.mxu0 %v1181
    %1379 = vmatmul.bf16.gmra.mxu0 %v776
    %v1380 = vpop.f32.mrf.mxu0
    %v1381 = vadd.f32 %v1367, %v1380
    %v1382 = vpop.f32.mrf.mxu0
    %v1383 = vadd.f32 %v1369, %v1382
    %1384 = vdwg.mxu0
    %1385 = vmatpush.bf16.msra.mxu0 %v1211
    %1386 = vmatpush.bf16.msra.mxu0 %v1209
    %1387 = vmatpush.bf16.msra.mxu0 %v1207
    %1388 = vmatpush.bf16.msra.mxu0 %v1205
    %1389 = vmatpush.bf16.msra.mxu0 %v1203
    %1390 = vmatpush.bf16.msra.mxu0 %v1201
    %1391 = vmatpush.bf16.msra.mxu0 %v1199
    %1392 = vmatpush.bf16.msra.mxu0 %v1197
    %1393 = vmatmul.bf16.gmra.mxu0 %v777
    %v1394 = vpop.f32.mrf.mxu0
    %v1395 = vadd.f32 %v1381, %v1394
    %v1396 = vpop.f32.mrf.mxu0
    %v1397 = vadd.f32 %v1383, %v1396
    %1398 = vdwg.mxu0
    %1399 = vmatpush.bf16.msra.mxu0 %v1227
    %1400 = vmatpush.bf16.msra.mxu0 %v1225
    %1401 = vmatpush.bf16.msra.mxu0 %v1223
    %1402 = vmatpush.bf16.msra.mxu0 %v1221
    %1403 = vmatpush.bf16.msra.mxu0 %v1219
    %1404 = vmatpush.bf16.msra.mxu0 %v1217
    %1405 = vmatpush.bf16.msra.mxu0 %v1215
    %1406 = vmatpush.bf16.msra.mxu0 %v1213
    %1407 = vmatmul.bf16.gmra.mxu0 %v778
    %v1408 = vpop.f32.mrf.mxu0
    %v1409 = vadd.f32 %v1395, %v1408
    %v1410 = vpop.f32.mrf.mxu0
    %v1411 = vadd.f32 %v1397, %v1410
    %1412 = vdwg.mxu0
    %1413 = vmatpush.bf16.msra.mxu0 %v1243
    %1414 = vmatpush.bf16.msra.mxu0 %v1241
    %1415 = vmatpush.bf16.msra.mxu0 %v1239
    %1416 = vmatpush.bf16.msra.mxu0 %v1237
    %1417 = vmatpush.bf16.msra.mxu0 %v1235
    %1418 = vmatpush.bf16.msra.mxu0 %v1233
    %1419 = vmatpush.bf16.msra.mxu0 %v1231
    %1420 = vmatpush.bf16.msra.mxu0 %v1229
    %1421 = vmatmul.bf16.gmra.mxu0 %v779
    %v1422 = vpop.f32.mrf.mxu0
    %v1423 = vadd.f32 %v1409, %v1422
    %v1424 = vpop.f32.mrf.mxu0
    %v1425 = vadd.f32 %v1411, %v1424
    %1426 = vdwg.mxu0
    %1427 = vmatpush.bf16.msra.mxu0 %v1259
    %1428 = vmatpush.bf16.msra.mxu0 %v1257
    %1429 = vmatpush.bf16.msra.mxu0 %v1255
    %1430 = vmatpush.bf16.msra.mxu0 %v1253
    %1431 = vmatpush.bf16.msra.mxu0 %v1251
    %1432 = vmatpush.bf16.msra.mxu0 %v1249
    %1433 = vmatpush.bf16.msra.mxu0 %v1247
    %1434 = vmatpush.bf16.msra.mxu0 %v1245
    %1435 = vmatmul.bf16.gmra.mxu0 %v780
    %v1436 = vpop.f32.mrf.mxu0
    %v1437 = vadd.f32 %v1423, %v1436
    %v1438 = vpop.f32.mrf.mxu0
    %v1439 = vadd.f32 %v1425, %v1438
    %1440 = vdwg.mxu0
    %1441 = vmatpush.bf16.msra.mxu0 %v1180
    %1442 = vmatpush.bf16.msra.mxu0 %v1178
    %1443 = vmatpush.bf16.msra.mxu0 %v1176
    %1444 = vmatpush.bf16.msra.mxu0 %v1174
    %1445 = vmatpush.bf16.msra.mxu0 %v1172
    %1446 = vmatpush.bf16.msra.mxu0 %v1170
    %1447 = vmatpush.bf16.msra.mxu0 %v1168
    %1448 = vmatpush.bf16.msra.mxu0 %v1166
    %1449 = vmatmul.bf16.gmra.mxu0 %v775
    %v1450 = vpop.f32.mrf.mxu0
    %v1451 = vadd.f32 0.0, %v1450
    %v1452 = vpop.f32.mrf.mxu0
    %v1453 = vadd.f32 0.0, %v1452
    %1454 = vdwg.mxu0
    %1455 = vmatpush.bf16.msra.mxu0 %v1196
    %1456 = vmatpush.bf16.msra.mxu0 %v1194
    %1457 = vmatpush.bf16.msra.mxu0 %v1192
    %1458 = vmatpush.bf16.msra.mxu0 %v1190
    %1459 = vmatpush.bf16.msra.mxu0 %v1188
    %1460 = vmatpush.bf16.msra.mxu0 %v1186
    %1461 = vmatpush.bf16.msra.mxu0 %v1184
    %1462 = vmatpush.bf16.msra.mxu0 %v1182
    %1463 = vmatmul.bf16.gmra.mxu0 %v776
    %v1464 = vpop.f32.mrf.mxu0
    %v1465 = vadd.f32 %v1451, %v1464
    %v1466 = vpop.f32.mrf.mxu0
    %v1467 = vadd.f32 %v1453, %v1466
    %1468 = vdwg.mxu0
    %1469 = vmatpush.bf16.msra.mxu0 %v1212
    %1470 = vmatpush.bf16.msra.mxu0 %v1210
    %1471 = vmatpush.bf16.msra.mxu0 %v1208
    %1472 = vmatpush.bf16.msra.mxu0 %v1206
    %1473 = vmatpush.bf16.msra.mxu0 %v1204
    %1474 = vmatpush.bf16.msra.mxu0 %v1202
    %1475 = vmatpush.bf16.msra.mxu0 %v1200
    %1476 = vmatpush.bf16.msra.mxu0 %v1198
    %1477 = vmatmul.bf16.gmra.mxu0 %v777
    %v1478 = vpop.f32.mrf.mxu0
    %v1479 = vadd.f32 %v1465, %v1478
    %v1480 = vpop.f32.mrf.mxu0
    %v1481 = vadd.f32 %v1467, %v1480
    %1482 = vdwg.mxu0
    %1483 = vmatpush.bf16.msra.mxu0 %v1228
    %1484 = vmatpush.bf16.msra.mxu0 %v1226
    %1485 = vmatpush.bf16.msra.mxu0 %v1224
    %1486 = vmatpush.bf16.msra.mxu0 %v1222
    %1487 = vmatpush.bf16.msra.mxu0 %v1220
    %1488 = vmatpush.bf16.msra.mxu0 %v1218
    %1489 = vmatpush.bf16.msra.mxu0 %v1216
    %1490 = vmatpush.bf16.msra.mxu0 %v1214
    %1491 = vmatmul.bf16.gmra.mxu0 %v778
    %v1492 = vpop.f32.mrf.mxu0
    %v1493 = vadd.f32 %v1479, %v1492
    %v1494 = vpop.f32.mrf.mxu0
    %v1495 = vadd.f32 %v1481, %v1494
    %1496 = vdwg.mxu0
    %1497 = vmatpush.bf16.msra.mxu0 %v1244
    %1498 = vmatpush.bf16.msra.mxu0 %v1242
    %1499 = vmatpush.bf16.msra.mxu0 %v1240
    %1500 = vmatpush.bf16.msra.mxu0 %v1238
    %1501 = vmatpush.bf16.msra.mxu0 %v1236
    %1502 = vmatpush.bf16.msra.mxu0 %v1234
    %1503 = vmatpush.bf16.msra.mxu0 %v1232
    %1504 = vmatpush.bf16.msra.mxu0 %v1230
    %1505 = vmatmul.bf16.gmra.mxu0 %v779
    %v1506 = vpop.f32.mrf.mxu0
    %v1507 = vadd.f32 %v1493, %v1506
    %v1508 = vpop.f32.mrf.mxu0
    %v1509 = vadd.f32 %v1495, %v1508
    %1510 = vdwg.mxu0
    %1511 = vmatpush.bf16.msra.mxu0 %v1260
    %1512 = vmatpush.bf16.msra.mxu0 %v1258
    %1513 = vmatpush.bf16.msra.mxu0 %v1256
    %1514 = vmatpush.bf16.msra.mxu0 %v1254
    %1515 = vmatpush.bf16.msra.mxu0 %v1252
    %1516 = vmatpush.bf16.msra.mxu0 %v1250
    %1517 = vmatpush.bf16.msra.mxu0 %v1248
    %1518 = vmatpush.bf16.msra.mxu0 %v1246
    %1519 = vmatmul.bf16.gmra.mxu0 %v780
    %v1520 = vpop.f32.mrf.mxu0
    %v1521 = vadd.f32 %v1507, %v1520
    %v1522 = vpop.f32.mrf.mxu0
    %v1523 = vadd.f32 %v1509, %v1522
    %1524 = vdwg.mxu0
    %v1525 = vmax.f32 %v1437, 0.0
    %v1526 = vmax.f32 %v1521, 0.0
    %v1527 = vmax.f32 %v1439, 0.0
    %v1528 = vmax.f32 %v1523, 0.0
    %v1533 = vrot.slane %v1525, 6
    %v1534 = vrot.slane %v1526, 6
    %v1535 = vrot.slane %v1527, 6
    %v1536 = vsel %vm704, %v1533, %v1535
    %v1537 = vrot.slane %v1528, 6
    %v1538 = vsel %vm704, %v1534, %v1537
    %1545 = vst [vmem:[#allocation4] sm:$0xfc] %v1533
    %1546 = vst [vmem:[#allocation4 + $0x8] sm:$0xfc] %v1534
    %1547 = vst [vmem:[#allocation4 + $0x10] sm:$0xff] %v1536
    %1548 = vst [vmem:[#allocation4 + $0x18] sm:$0xff] %v1538
    %1549 = vst [vmem:[#allocation4 + $0x20] sm:$0x3] %v1535
    %1550 = vst [vmem:[#allocation4 + $0x28] sm:$0x3] %v1537
    %v1551 = vld [vmem:[#allocation4] sm:$0xff]
    %v1552 = vld [vmem:[#allocation4 + $0x8] sm:$0xff]
    %v1553 = vld [vmem:[#allocation4 + $0x10] sm:$0xff]
    %v1554 = vld [vmem:[#allocation4 + $0x18] sm:$0xff]
    %v1555 = vld [vmem:[#allocation4] sm:$0xfc]
    %v1556 = vld [vmem:[#allocation4 + $0x8] sm:$0xfc]
    %v1557 = vld [vmem:[#allocation4 + $0x20] sm:$0x3]
    %v1558 = vld [vmem:[#allocation4 + $0x28] sm:$0x3]
    %v1559 = vld [vmem:[#allocation4] sm:$0xf0]
    %v1560 = vld [vmem:[#allocation4 + $0x8] sm:$0xf0]
    %v1561 = vld [vmem:[#allocation4 + $0x20] sm:$0xf]
    %v1562 = vld [vmem:[#allocation4 + $0x28] sm:$0xf]
    %v1569 = vrot.slane %v1555, 2
    %v1570 = vrot.slane %v1553, 2
    %v1571 = vsel %vm741, %v1569, %v1570
    %v1572 = vrot.slane %v1556, 2
    %v1573 = vrot.slane %v1554, 2
    %v1574 = vsel %vm741, %v1572, %v1573
    %v1575 = vrot.slane %v1557, 2
    %v1576 = vsel %vm741, %v1570, %v1575
    %v1577 = vrot.slane %v1558, 2
    %v1578 = vsel %vm741, %v1573, %v1577
    %v1587 = vrot.slane %v1559, 4
    %v1588 = vrot.slane %v1553, 4
    %v1589 = vsel %vm760, %v1587, %v1588
    %v1590 = vrot.slane %v1560, 4
    %v1591 = vrot.slane %v1554, 4
    %v1592 = vsel %vm760, %v1590, %v1591
    %v1593 = vrot.slane %v1561, 4
    %v1594 = vsel %vm760, %v1588, %v1593
    %v1595 = vrot.slane %v1562, 4
    %v1596 = vsel %vm760, %v1591, %v1595
    %v1601 = vpack.c.bf16 %v1553, %v1551
    %v1602 = vpack.c.bf16 %v1554, %v1552
    %v1603 = vpack.c.bf16 %v1576, %v1571
    %v1604 = vpack.c.bf16 %v1578, %v1574
    %v1605 = vpack.c.bf16 %v1594, %v1589
    %v1606 = vpack.c.bf16 %v1596, %v1592
    %v1607 = vld [vmem:[#allocation9] sm:$0xff]
    %v1608 = vld [vmem:[#allocation9 + $0x8] sm:$0xff]
    %v1609 = vld [vmem:[#allocation9 + $0x10] sm:$0xff]
    %v1610 = vld [vmem:[#allocation9 + $0x18] sm:$0xff]
    %v1611 = vld [vmem:[#allocation9 + $0x20] sm:$0xff]
    %v1612 = vld [vmem:[#allocation9 + $0x28] sm:$0xff]
    %v1613 = vld [vmem:[#allocation9 + $0x30] sm:$0xff]
    %v1614 = vld [vmem:[#allocation9 + $0x38] sm:$0xff]
    %v1615 = vld [vmem:[#allocation9 + $0x40] sm:$0xff]
    %v1616 = vld [vmem:[#allocation9 + $0x48] sm:$0xff]
    %v1617 = vld [vmem:[#allocation9 + $0x50] sm:$0xff]
    %v1618 = vld [vmem:[#allocation9 + $0x58] sm:$0xff]
    %v1619 = vld [vmem:[#allocation9 + $0x60] sm:$0xff]
    %v1620 = vld [vmem:[#allocation9 + $0x68] sm:$0xff]
    %v1621 = vld [vmem:[#allocation9 + $0x70] sm:$0xff]
    %v1622 = vld [vmem:[#allocation9 + $0x78] sm:$0xff]
    %v1623 = vld [vmem:[#allocation9 + $0x80] sm:$0xff]
    %v1624 = vld [vmem:[#allocation9 + $0x88] sm:$0xff]
    %v1625 = vld [vmem:[#allocation9 + $0x90] sm:$0xff]
    %v1626 = vld [vmem:[#allocation9 + $0x98] sm:$0xff]
    %v1627 = vld [vmem:[#allocation9 + $0xa0] sm:$0xff]
    %v1628 = vld [vmem:[#allocation9 + $0xa8] sm:$0xff]
    %v1629 = vld [vmem:[#allocation9 + $0xb0] sm:$0xff]
    %v1630 = vld [vmem:[#allocation9 + $0xb8] sm:$0xff]
    %v1631 = vld [vmem:[#allocation9 + $0xc0] sm:$0xff]
    %v1632 = vld [vmem:[#allocation9 + $0xc8] sm:$0xff]
    %v1633 = vld [vmem:[#allocation9 + $0xd0] sm:$0xff]
    %v1634 = vld [vmem:[#allocation9 + $0xd8] sm:$0xff]
    %v1635 = vld [vmem:[#allocation9 + $0xe0] sm:$0xff]
    %v1636 = vld [vmem:[#allocation9 + $0xe8] sm:$0xff]
    %v1637 = vld [vmem:[#allocation9 + $0xf0] sm:$0xff]
    %v1638 = vld [vmem:[#allocation9 + $0xf8] sm:$0xff]
    %v1639 = vld [vmem:[#allocation9 + $0x100] sm:$0xff]
    %v1640 = vld [vmem:[#allocation9 + $0x108] sm:$0xff]
    %v1641 = vld [vmem:[#allocation9 + $0x110] sm:$0xff]
    %v1642 = vld [vmem:[#allocation9 + $0x118] sm:$0xff]
    %v1643 = vld [vmem:[#allocation9 + $0x120] sm:$0xff]
    %v1644 = vld [vmem:[#allocation9 + $0x128] sm:$0xff]
    %v1645 = vld [vmem:[#allocation9 + $0x130] sm:$0xff]
    %v1646 = vld [vmem:[#allocation9 + $0x138] sm:$0xff]
    %v1647 = vld [vmem:[#allocation9 + $0x140] sm:$0xff]
    %v1648 = vld [vmem:[#allocation9 + $0x148] sm:$0xff]
    %v1649 = vld [vmem:[#allocation9 + $0x150] sm:$0xff]
    %v1650 = vld [vmem:[#allocation9 + $0x158] sm:$0xff]
    %v1651 = vld [vmem:[#allocation9 + $0x160] sm:$0xff]
    %v1652 = vld [vmem:[#allocation9 + $0x168] sm:$0xff]
    %v1653 = vld [vmem:[#allocation9 + $0x170] sm:$0xff]
    %v1654 = vld [vmem:[#allocation9 + $0x178] sm:$0xff]
    %v1655 = vld [vmem:[#allocation9 + $0x180] sm:$0xff]
    %v1656 = vld [vmem:[#allocation9 + $0x188] sm:$0xff]
    %v1657 = vld [vmem:[#allocation9 + $0x190] sm:$0xff]
    %v1658 = vld [vmem:[#allocation9 + $0x198] sm:$0xff]
    %v1659 = vld [vmem:[#allocation9 + $0x1a0] sm:$0xff]
    %v1660 = vld [vmem:[#allocation9 + $0x1a8] sm:$0xff]
    %v1661 = vld [vmem:[#allocation9 + $0x1b0] sm:$0xff]
    %v1662 = vld [vmem:[#allocation9 + $0x1b8] sm:$0xff]
    %v1663 = vld [vmem:[#allocation9 + $0x1c0] sm:$0xff]
    %v1664 = vld [vmem:[#allocation9 + $0x1c8] sm:$0xff]
    %v1665 = vld [vmem:[#allocation9 + $0x1d0] sm:$0xff]
    %v1666 = vld [vmem:[#allocation9 + $0x1d8] sm:$0xff]
    %v1667 = vld [vmem:[#allocation9 + $0x1e0] sm:$0xff]
    %v1668 = vld [vmem:[#allocation9 + $0x1e8] sm:$0xff]
    %v1669 = vld [vmem:[#allocation9 + $0x1f0] sm:$0xff]
    %v1670 = vld [vmem:[#allocation9 + $0x1f8] sm:$0xff]
    %v1671 = vld [vmem:[#allocation9 + $0x200] sm:$0xff]
    %v1672 = vld [vmem:[#allocation9 + $0x208] sm:$0xff]
    %v1673 = vld [vmem:[#allocation9 + $0x210] sm:$0xff]
    %v1674 = vld [vmem:[#allocation9 + $0x218] sm:$0xff]
    %v1675 = vld [vmem:[#allocation9 + $0x220] sm:$0xff]
    %v1676 = vld [vmem:[#allocation9 + $0x228] sm:$0xff]
    %v1677 = vld [vmem:[#allocation9 + $0x230] sm:$0xff]
    %v1678 = vld [vmem:[#allocation9 + $0x238] sm:$0xff]
    %v1679 = vld [vmem:[#allocation9 + $0x240] sm:$0xff]
    %v1680 = vld [vmem:[#allocation9 + $0x248] sm:$0xff]
    %v1681 = vld [vmem:[#allocation9 + $0x250] sm:$0xff]
    %v1682 = vld [vmem:[#allocation9 + $0x258] sm:$0xff]
    %v1683 = vld [vmem:[#allocation9 + $0x260] sm:$0xff]
    %v1684 = vld [vmem:[#allocation9 + $0x268] sm:$0xff]
    %v1685 = vld [vmem:[#allocation9 + $0x270] sm:$0xff]
    %v1686 = vld [vmem:[#allocation9 + $0x278] sm:$0xff]
    %v1687 = vld [vmem:[#allocation9 + $0x280] sm:$0xff]
    %v1688 = vld [vmem:[#allocation9 + $0x288] sm:$0xff]
    %v1689 = vld [vmem:[#allocation9 + $0x290] sm:$0xff]
    %v1690 = vld [vmem:[#allocation9 + $0x298] sm:$0xff]
    %v1691 = vld [vmem:[#allocation9 + $0x2a0] sm:$0xff]
    %v1692 = vld [vmem:[#allocation9 + $0x2a8] sm:$0xff]
    %v1693 = vld [vmem:[#allocation9 + $0x2b0] sm:$0xff]
    %v1694 = vld [vmem:[#allocation9 + $0x2b8] sm:$0xff]
    %v1695 = vld [vmem:[#allocation9 + $0x2c0] sm:$0xff]
    %v1696 = vld [vmem:[#allocation9 + $0x2c8] sm:$0xff]
    %v1697 = vld [vmem:[#allocation9 + $0x2d0] sm:$0xff]
    %v1698 = vld [vmem:[#allocation9 + $0x2d8] sm:$0xff]
    %v1699 = vld [vmem:[#allocation9 + $0x2e0] sm:$0xff]
    %v1700 = vld [vmem:[#allocation9 + $0x2e8] sm:$0xff]
    %v1701 = vld [vmem:[#allocation9 + $0x2f0] sm:$0xff]
    %v1702 = vld [vmem:[#allocation9 + $0x2f8] sm:$0xff]
    %v1799 = vunpack.c.l.b16 %v1607
    %v1800 = vunpack.c.h.b16 %v1607
    %v1801 = vunpack.c.l.b16 %v1608
    %v1802 = vunpack.c.h.b16 %v1608
    %v1803 = vunpack.c.l.b16 %v1609
    %v1804 = vunpack.c.h.b16 %v1609
    %v1805 = vunpack.c.l.b16 %v1610
    %v1806 = vunpack.c.h.b16 %v1610
    %v1807 = vunpack.c.l.b16 %v1611
    %v1808 = vunpack.c.h.b16 %v1611
    %v1809 = vunpack.c.l.b16 %v1612
    %v1810 = vunpack.c.h.b16 %v1612
    %v1811 = vunpack.c.l.b16 %v1613
    %v1812 = vunpack.c.h.b16 %v1613
    %v1813 = vunpack.c.l.b16 %v1614
    %v1814 = vunpack.c.h.b16 %v1614
    %v1815 = vunpack.c.l.b16 %v1615
    %v1816 = vunpack.c.h.b16 %v1615
    %v1817 = vunpack.c.l.b16 %v1616
    %v1818 = vunpack.c.h.b16 %v1616
    %v1819 = vunpack.c.l.b16 %v1617
    %v1820 = vunpack.c.h.b16 %v1617
    %v1821 = vunpack.c.l.b16 %v1618
    %v1822 = vunpack.c.h.b16 %v1618
    %v1823 = vunpack.c.l.b16 %v1619
    %v1824 = vunpack.c.h.b16 %v1619
    %v1825 = vunpack.c.l.b16 %v1620
    %v1826 = vunpack.c.h.b16 %v1620
    %v1827 = vunpack.c.l.b16 %v1621
    %v1828 = vunpack.c.h.b16 %v1621
    %v1829 = vunpack.c.l.b16 %v1622
    %v1830 = vunpack.c.h.b16 %v1622
    %v1831 = vunpack.c.l.b16 %v1623
    %v1832 = vunpack.c.h.b16 %v1623
    %v1833 = vunpack.c.l.b16 %v1624
    %v1834 = vunpack.c.h.b16 %v1624
    %v1835 = vunpack.c.l.b16 %v1625
    %v1836 = vunpack.c.h.b16 %v1625
    %v1837 = vunpack.c.l.b16 %v1626
    %v1838 = vunpack.c.h.b16 %v1626
    %v1839 = vunpack.c.l.b16 %v1627
    %v1840 = vunpack.c.h.b16 %v1627
    %v1841 = vunpack.c.l.b16 %v1628
    %v1842 = vunpack.c.h.b16 %v1628
    %v1843 = vunpack.c.l.b16 %v1629
    %v1844 = vunpack.c.h.b16 %v1629
    %v1845 = vunpack.c.l.b16 %v1630
    %v1846 = vunpack.c.h.b16 %v1630
    %v1847 = vunpack.c.l.b16 %v1631
    %v1848 = vunpack.c.h.b16 %v1631
    %v1849 = vunpack.c.l.b16 %v1632
    %v1850 = vunpack.c.h.b16 %v1632
    %v1851 = vunpack.c.l.b16 %v1633
    %v1852 = vunpack.c.h.b16 %v1633
    %v1853 = vunpack.c.l.b16 %v1634
    %v1854 = vunpack.c.h.b16 %v1634
    %v1855 = vunpack.c.l.b16 %v1635
    %v1856 = vunpack.c.h.b16 %v1635
    %v1857 = vunpack.c.l.b16 %v1636
    %v1858 = vunpack.c.h.b16 %v1636
    %v1859 = vunpack.c.l.b16 %v1637
    %v1860 = vunpack.c.h.b16 %v1637
    %v1861 = vunpack.c.l.b16 %v1638
    %v1862 = vunpack.c.h.b16 %v1638
    %v1863 = vunpack.c.l.b16 %v1639
    %v1864 = vunpack.c.h.b16 %v1639
    %v1865 = vunpack.c.l.b16 %v1640
    %v1866 = vunpack.c.h.b16 %v1640
    %v1867 = vunpack.c.l.b16 %v1641
    %v1868 = vunpack.c.h.b16 %v1641
    %v1869 = vunpack.c.l.b16 %v1642
    %v1870 = vunpack.c.h.b16 %v1642
    %v1871 = vunpack.c.l.b16 %v1643
    %v1872 = vunpack.c.h.b16 %v1643
    %v1873 = vunpack.c.l.b16 %v1644
    %v1874 = vunpack.c.h.b16 %v1644
    %v1875 = vunpack.c.l.b16 %v1645
    %v1876 = vunpack.c.h.b16 %v1645
    %v1877 = vunpack.c.l.b16 %v1646
    %v1878 = vunpack.c.h.b16 %v1646
    %v1879 = vunpack.c.l.b16 %v1647
    %v1880 = vunpack.c.h.b16 %v1647
    %v1881 = vunpack.c.l.b16 %v1648
    %v1882 = vunpack.c.h.b16 %v1648
    %v1883 = vunpack.c.l.b16 %v1649
    %v1884 = vunpack.c.h.b16 %v1649
    %v1885 = vunpack.c.l.b16 %v1650
    %v1886 = vunpack.c.h.b16 %v1650
    %v1887 = vunpack.c.l.b16 %v1651
    %v1888 = vunpack.c.h.b16 %v1651
    %v1889 = vunpack.c.l.b16 %v1652
    %v1890 = vunpack.c.h.b16 %v1652
    %v1891 = vunpack.c.l.b16 %v1653
    %v1892 = vunpack.c.h.b16 %v1653
    %v1893 = vunpack.c.l.b16 %v1654
    %v1894 = vunpack.c.h.b16 %v1654
    %v1895 = vunpack.c.l.b16 %v1655
    %v1896 = vunpack.c.h.b16 %v1655
    %v1897 = vunpack.c.l.b16 %v1656
    %v1898 = vunpack.c.h.b16 %v1656
    %v1899 = vunpack.c.l.b16 %v1657
    %v1900 = vunpack.c.h.b16 %v1657
    %v1901 = vunpack.c.l.b16 %v1658
    %v1902 = vunpack.c.h.b16 %v1658
    %v1903 = vunpack.c.l.b16 %v1659
    %v1904 = vunpack.c.h.b16 %v1659
    %v1905 = vunpack.c.l.b16 %v1660
    %v1906 = vunpack.c.h.b16 %v1660
    %v1907 = vunpack.c.l.b16 %v1661
    %v1908 = vunpack.c.h.b16 %v1661
    %v1909 = vunpack.c.l.b16 %v1662
    %v1910 = vunpack.c.h.b16 %v1662
    %v1911 = vunpack.c.l.b16 %v1663
    %v1912 = vunpack.c.h.b16 %v1663
    %v1913 = vunpack.c.l.b16 %v1664
    %v1914 = vunpack.c.h.b16 %v1664
    %v1915 = vunpack.c.l.b16 %v1665
    %v1916 = vunpack.c.h.b16 %v1665
    %v1917 = vunpack.c.l.b16 %v1666
    %v1918 = vunpack.c.h.b16 %v1666
    %v1919 = vunpack.c.l.b16 %v1667
    %v1920 = vunpack.c.h.b16 %v1667
    %v1921 = vunpack.c.l.b16 %v1668
    %v1922 = vunpack.c.h.b16 %v1668
    %v1923 = vunpack.c.l.b16 %v1669
    %v1924 = vunpack.c.h.b16 %v1669
    %v1925 = vunpack.c.l.b16 %v1670
    %v1926 = vunpack.c.h.b16 %v1670
    %v1927 = vunpack.c.l.b16 %v1671
    %v1928 = vunpack.c.h.b16 %v1671
    %v1929 = vunpack.c.l.b16 %v1672
    %v1930 = vunpack.c.h.b16 %v1672
    %v1931 = vunpack.c.l.b16 %v1673
    %v1932 = vunpack.c.h.b16 %v1673
    %v1933 = vunpack.c.l.b16 %v1674
    %v1934 = vunpack.c.h.b16 %v1674
    %v1935 = vunpack.c.l.b16 %v1675
    %v1936 = vunpack.c.h.b16 %v1675
    %v1937 = vunpack.c.l.b16 %v1676
    %v1938 = vunpack.c.h.b16 %v1676
    %v1939 = vunpack.c.l.b16 %v1677
    %v1940 = vunpack.c.h.b16 %v1677
    %v1941 = vunpack.c.l.b16 %v1678
    %v1942 = vunpack.c.h.b16 %v1678
    %v1943 = vunpack.c.l.b16 %v1679
    %v1944 = vunpack.c.h.b16 %v1679
    %v1945 = vunpack.c.l.b16 %v1680
    %v1946 = vunpack.c.h.b16 %v1680
    %v1947 = vunpack.c.l.b16 %v1681
    %v1948 = vunpack.c.h.b16 %v1681
    %v1949 = vunpack.c.l.b16 %v1682
    %v1950 = vunpack.c.h.b16 %v1682
    %v1951 = vunpack.c.l.b16 %v1683
    %v1952 = vunpack.c.h.b16 %v1683
    %v1953 = vunpack.c.l.b16 %v1684
    %v1954 = vunpack.c.h.b16 %v1684
    %v1955 = vunpack.c.l.b16 %v1685
    %v1956 = vunpack.c.h.b16 %v1685
    %v1957 = vunpack.c.l.b16 %v1686
    %v1958 = vunpack.c.h.b16 %v1686
    %v1959 = vunpack.c.l.b16 %v1687
    %v1960 = vunpack.c.h.b16 %v1687
    %v1961 = vunpack.c.l.b16 %v1688
    %v1962 = vunpack.c.h.b16 %v1688
    %v1963 = vunpack.c.l.b16 %v1689
    %v1964 = vunpack.c.h.b16 %v1689
    %v1965 = vunpack.c.l.b16 %v1690
    %v1966 = vunpack.c.h.b16 %v1690
    %v1967 = vunpack.c.l.b16 %v1691
    %v1968 = vunpack.c.h.b16 %v1691
    %v1969 = vunpack.c.l.b16 %v1692
    %v1970 = vunpack.c.h.b16 %v1692
    %v1971 = vunpack.c.l.b16 %v1693
    %v1972 = vunpack.c.h.b16 %v1693
    %v1973 = vunpack.c.l.b16 %v1694
    %v1974 = vunpack.c.h.b16 %v1694
    %v1975 = vunpack.c.l.b16 %v1695
    %v1976 = vunpack.c.h.b16 %v1695
    %v1977 = vunpack.c.l.b16 %v1696
    %v1978 = vunpack.c.h.b16 %v1696
    %v1979 = vunpack.c.l.b16 %v1697
    %v1980 = vunpack.c.h.b16 %v1697
    %v1981 = vunpack.c.l.b16 %v1698
    %v1982 = vunpack.c.h.b16 %v1698
    %v1983 = vunpack.c.l.b16 %v1699
    %v1984 = vunpack.c.h.b16 %v1699
    %v1985 = vunpack.c.l.b16 %v1700
    %v1986 = vunpack.c.h.b16 %v1700
    %v1987 = vunpack.c.l.b16 %v1701
    %v1988 = vunpack.c.h.b16 %v1701
    %v1989 = vunpack.c.l.b16 %v1702
    %v1990 = vunpack.c.h.b16 %v1702
    %v1991 = vpack.c.b16 %v1801, %v1799
    %v1992 = vpack.c.b16 %v1802, %v1800
    %v1993 = vpack.c.b16 %v1805, %v1803
    %v1994 = vpack.c.b16 %v1806, %v1804
    %v1995 = vpack.c.b16 %v1809, %v1807
    %v1996 = vpack.c.b16 %v1810, %v1808
    %v1997 = vpack.c.b16 %v1813, %v1811
    %v1998 = vpack.c.b16 %v1814, %v1812
    %v1999 = vpack.c.b16 %v1817, %v1815
    %v2000 = vpack.c.b16 %v1818, %v1816
    %v2001 = vpack.c.b16 %v1821, %v1819
    %v2002 = vpack.c.b16 %v1822, %v1820
    %v2003 = vpack.c.b16 %v1825, %v1823
    %v2004 = vpack.c.b16 %v1826, %v1824
    %v2005 = vpack.c.b16 %v1829, %v1827
    %v2006 = vpack.c.b16 %v1830, %v1828
    %v2007 = vpack.c.b16 %v1833, %v1831
    %v2008 = vpack.c.b16 %v1834, %v1832
    %v2009 = vpack.c.b16 %v1837, %v1835
    %v2010 = vpack.c.b16 %v1838, %v1836
    %v2011 = vpack.c.b16 %v1841, %v1839
    %v2012 = vpack.c.b16 %v1842, %v1840
    %v2013 = vpack.c.b16 %v1845, %v1843
    %v2014 = vpack.c.b16 %v1846, %v1844
    %v2015 = vpack.c.b16 %v1849, %v1847
    %v2016 = vpack.c.b16 %v1850, %v1848
    %v2017 = vpack.c.b16 %v1853, %v1851
    %v2018 = vpack.c.b16 %v1854, %v1852
    %v2019 = vpack.c.b16 %v1857, %v1855
    %v2020 = vpack.c.b16 %v1858, %v1856
    %v2021 = vpack.c.b16 %v1861, %v1859
    %v2022 = vpack.c.b16 %v1862, %v1860
    %v2023 = vpack.c.b16 %v1865, %v1863
    %v2024 = vpack.c.b16 %v1866, %v1864
    %v2025 = vpack.c.b16 %v1869, %v1867
    %v2026 = vpack.c.b16 %v1870, %v1868
    %v2027 = vpack.c.b16 %v1873, %v1871
    %v2028 = vpack.c.b16 %v1874, %v1872
    %v2029 = vpack.c.b16 %v1877, %v1875
    %v2030 = vpack.c.b16 %v1878, %v1876
    %v2031 = vpack.c.b16 %v1881, %v1879
    %v2032 = vpack.c.b16 %v1882, %v1880
    %v2033 = vpack.c.b16 %v1885, %v1883
    %v2034 = vpack.c.b16 %v1886, %v1884
    %v2035 = vpack.c.b16 %v1889, %v1887
    %v2036 = vpack.c.b16 %v1890, %v1888
    %v2037 = vpack.c.b16 %v1893, %v1891
    %v2038 = vpack.c.b16 %v1894, %v1892
    %v2039 = vpack.c.b16 %v1897, %v1895
    %v2040 = vpack.c.b16 %v1898, %v1896
    %v2041 = vpack.c.b16 %v1901, %v1899
    %v2042 = vpack.c.b16 %v1902, %v1900
    %v2043 = vpack.c.b16 %v1905, %v1903
    %v2044 = vpack.c.b16 %v1906, %v1904
    %v2045 = vpack.c.b16 %v1909, %v1907
    %v2046 = vpack.c.b16 %v1910, %v1908
    %v2047 = vpack.c.b16 %v1913, %v1911
    %v2048 = vpack.c.b16 %v1914, %v1912
    %v2049 = vpack.c.b16 %v1917, %v1915
    %v2050 = vpack.c.b16 %v1918, %v1916
    %v2051 = vpack.c.b16 %v1921, %v1919
    %v2052 = vpack.c.b16 %v1922, %v1920
    %v2053 = vpack.c.b16 %v1925, %v1923
    %v2054 = vpack.c.b16 %v1926, %v1924
    %v2055 = vpack.c.b16 %v1929, %v1927
    %v2056 = vpack.c.b16 %v1930, %v1928
    %v2057 = vpack.c.b16 %v1933, %v1931
    %v2058 = vpack.c.b16 %v1934, %v1932
    %v2059 = vpack.c.b16 %v1937, %v1935
    %v2060 = vpack.c.b16 %v1938, %v1936
    %v2061 = vpack.c.b16 %v1941, %v1939
    %v2062 = vpack.c.b16 %v1942, %v1940
    %v2063 = vpack.c.b16 %v1945, %v1943
    %v2064 = vpack.c.b16 %v1946, %v1944
    %v2065 = vpack.c.b16 %v1949, %v1947
    %v2066 = vpack.c.b16 %v1950, %v1948
    %v2067 = vpack.c.b16 %v1953, %v1951
    %v2068 = vpack.c.b16 %v1954, %v1952
    %v2069 = vpack.c.b16 %v1957, %v1955
    %v2070 = vpack.c.b16 %v1958, %v1956
    %v2071 = vpack.c.b16 %v1961, %v1959
    %v2072 = vpack.c.b16 %v1962, %v1960
    %v2073 = vpack.c.b16 %v1965, %v1963
    %v2074 = vpack.c.b16 %v1966, %v1964
    %v2075 = vpack.c.b16 %v1969, %v1967
    %v2076 = vpack.c.b16 %v1970, %v1968
    %v2077 = vpack.c.b16 %v1973, %v1971
    %v2078 = vpack.c.b16 %v1974, %v1972
    %v2079 = vpack.c.b16 %v1977, %v1975
    %v2080 = vpack.c.b16 %v1978, %v1976
    %v2081 = vpack.c.b16 %v1981, %v1979
    %v2082 = vpack.c.b16 %v1982, %v1980
    %v2083 = vpack.c.b16 %v1985, %v1983
    %v2084 = vpack.c.b16 %v1986, %v1984
    %v2085 = vpack.c.b16 %v1989, %v1987
    %v2086 = vpack.c.b16 %v1990, %v1988
    %2183 = vmatpush.bf16.msra.mxu0 %v2005
    %2184 = vmatpush.bf16.msra.mxu0 %v2003
    %2185 = vmatpush.bf16.msra.mxu0 %v2001
    %2186 = vmatpush.bf16.msra.mxu0 %v1999
    %2187 = vmatpush.bf16.msra.mxu0 %v1997
    %2188 = vmatpush.bf16.msra.mxu0 %v1995
    %2189 = vmatpush.bf16.msra.mxu0 %v1993
    %2190 = vmatpush.bf16.msra.mxu0 %v1991
    %2191 = vmatmul.bf16.gmra.mxu0 %v1601
    %v2192 = vpop.f32.mrf.mxu0
    %v2193 = vadd.f32 0.0, %v2192
    %v2194 = vpop.f32.mrf.mxu0
    %v2195 = vadd.f32 0.0, %v2194
    %2196 = vdwg.mxu0
    %2197 = vmatpush.bf16.msra.mxu0 %v2021
    %2198 = vmatpush.bf16.msra.mxu0 %v2019
    %2199 = vmatpush.bf16.msra.mxu0 %v2017
    %2200 = vmatpush.bf16.msra.mxu0 %v2015
    %2201 = vmatpush.bf16.msra.mxu0 %v2013
    %2202 = vmatpush.bf16.msra.mxu0 %v2011
    %2203 = vmatpush.bf16.msra.mxu0 %v2009
    %2204 = vmatpush.bf16.msra.mxu0 %v2007
    %2205 = vmatmul.bf16.gmra.mxu0 %v1602
    %v2206 = vpop.f32.mrf.mxu0
    %v2207 = vadd.f32 %v2193, %v2206
    %v2208 = vpop.f32.mrf.mxu0
    %v2209 = vadd.f32 %v2195, %v2208
    %2210 = vdwg.mxu0
    %2211 = vmatpush.bf16.msra.mxu0 %v2037
    %2212 = vmatpush.bf16.msra.mxu0 %v2035
    %2213 = vmatpush.bf16.msra.mxu0 %v2033
    %2214 = vmatpush.bf16.msra.mxu0 %v2031
    %2215 = vmatpush.bf16.msra.mxu0 %v2029
    %2216 = vmatpush.bf16.msra.mxu0 %v2027
    %2217 = vmatpush.bf16.msra.mxu0 %v2025
    %2218 = vmatpush.bf16.msra.mxu0 %v2023
    %2219 = vmatmul.bf16.gmra.mxu0 %v1603
    %v2220 = vpop.f32.mrf.mxu0
    %v2221 = vadd.f32 %v2207, %v2220
    %v2222 = vpop.f32.mrf.mxu0
    %v2223 = vadd.f32 %v2209, %v2222
    %2224 = vdwg.mxu0
    %2225 = vmatpush.bf16.msra.mxu0 %v2053
    %2226 = vmatpush.bf16.msra.mxu0 %v2051
    %2227 = vmatpush.bf16.msra.mxu0 %v2049
    %2228 = vmatpush.bf16.msra.mxu0 %v2047
    %2229 = vmatpush.bf16.msra.mxu0 %v2045
    %2230 = vmatpush.bf16.msra.mxu0 %v2043
    %2231 = vmatpush.bf16.msra.mxu0 %v2041
    %2232 = vmatpush.bf16.msra.mxu0 %v2039
    %2233 = vmatmul.bf16.gmra.mxu0 %v1604
    %v2234 = vpop.f32.mrf.mxu0
    %v2235 = vadd.f32 %v2221, %v2234
    %v2236 = vpop.f32.mrf.mxu0
    %v2237 = vadd.f32 %v2223, %v2236
    %2238 = vdwg.mxu0
    %2239 = vmatpush.bf16.msra.mxu0 %v2069
    %2240 = vmatpush.bf16.msra.mxu0 %v2067
    %2241 = vmatpush.bf16.msra.mxu0 %v2065
    %2242 = vmatpush.bf16.msra.mxu0 %v2063
    %2243 = vmatpush.bf16.msra.mxu0 %v2061
    %2244 = vmatpush.bf16.msra.mxu0 %v2059
    %2245 = vmatpush.bf16.msra.mxu0 %v2057
    %2246 = vmatpush.bf16.msra.mxu0 %v2055
    %2247 = vmatmul.bf16.gmra.mxu0 %v1605
    %v2248 = vpop.f32.mrf.mxu0
    %v2249 = vadd.f32 %v2235, %v2248
    %v2250 = vpop.f32.mrf.mxu0
    %v2251 = vadd.f32 %v2237, %v2250
    %2252 = vdwg.mxu0
    %2253 = vmatpush.bf16.msra.mxu0 %v2085
    %2254 = vmatpush.bf16.msra.mxu0 %v2083
    %2255 = vmatpush.bf16.msra.mxu0 %v2081
    %2256 = vmatpush.bf16.msra.mxu0 %v2079
    %2257 = vmatpush.bf16.msra.mxu0 %v2077
    %2258 = vmatpush.bf16.msra.mxu0 %v2075
    %2259 = vmatpush.bf16.msra.mxu0 %v2073
    %2260 = vmatpush.bf16.msra.mxu0 %v2071
    %2261 = vmatmul.bf16.gmra.mxu0 %v1606
    %v2262 = vpop.f32.mrf.mxu0
    %v2263 = vadd.f32 %v2249, %v2262
    %v2264 = vpop.f32.mrf.mxu0
    %v2265 = vadd.f32 %v2251, %v2264
    %2266 = vdwg.mxu0
    %2267 = vmatpush.bf16.msra.mxu0 %v2006
    %2268 = vmatpush.bf16.msra.mxu0 %v2004
    %2269 = vmatpush.bf16.msra.mxu0 %v2002
    %2270 = vmatpush.bf16.msra.mxu0 %v2000
    %2271 = vmatpush.bf16.msra.mxu0 %v1998
    %2272 = vmatpush.bf16.msra.mxu0 %v1996
    %2273 = vmatpush.bf16.msra.mxu0 %v1994
    %2274 = vmatpush.bf16.msra.mxu0 %v1992
    %2275 = vmatmul.bf16.gmra.mxu0 %v1601
    %v2276 = vpop.f32.mrf.mxu0
    %v2277 = vadd.f32 0.0, %v2276
    %v2278 = vpop.f32.mrf.mxu0
    %v2279 = vadd.f32 0.0, %v2278
    %2280 = vdwg.mxu0
    %2281 = vmatpush.bf16.msra.mxu0 %v2022
    %2282 = vmatpush.bf16.msra.mxu0 %v2020
    %2283 = vmatpush.bf16.msra.mxu0 %v2018
    %2284 = vmatpush.bf16.msra.mxu0 %v2016
    %2285 = vmatpush.bf16.msra.mxu0 %v2014
    %2286 = vmatpush.bf16.msra.mxu0 %v2012
    %2287 = vmatpush.bf16.msra.mxu0 %v2010
    %2288 = vmatpush.bf16.msra.mxu0 %v2008
    %2289 = vmatmul.bf16.gmra.mxu0 %v1602
    %v2290 = vpop.f32.mrf.mxu0
    %v2291 = vadd.f32 %v2277, %v2290
    %v2292 = vpop.f32.mrf.mxu0
    %v2293 = vadd.f32 %v2279, %v2292
    %2294 = vdwg.mxu0
    %2295 = vmatpush.bf16.msra.mxu0 %v2038
    %2296 = vmatpush.bf16.msra.mxu0 %v2036
    %2297 = vmatpush.bf16.msra.mxu0 %v2034
    %2298 = vmatpush.bf16.msra.mxu0 %v2032
    %2299 = vmatpush.bf16.msra.mxu0 %v2030
    %2300 = vmatpush.bf16.msra.mxu0 %v2028
    %2301 = vmatpush.bf16.msra.mxu0 %v2026
    %2302 = vmatpush.bf16.msra.mxu0 %v2024
    %2303 = vmatmul.bf16.gmra.mxu0 %v1603
    %v2304 = vpop.f32.mrf.mxu0
    %v2305 = vadd.f32 %v2291, %v2304
    %v2306 = vpop.f32.mrf.mxu0
    %v2307 = vadd.f32 %v2293, %v2306
    %2308 = vdwg.mxu0
    %2309 = vmatpush.bf16.msra.mxu0 %v2054
    %2310 = vmatpush.bf16.msra.mxu0 %v2052
    %2311 = vmatpush.bf16.msra.mxu0 %v2050
    %2312 = vmatpush.bf16.msra.mxu0 %v2048
    %2313 = vmatpush.bf16.msra.mxu0 %v2046
    %2314 = vmatpush.bf16.msra.mxu0 %v2044
    %2315 = vmatpush.bf16.msra.mxu0 %v2042
    %2316 = vmatpush.bf16.msra.mxu0 %v2040
    %2317 = vmatmul.bf16.gmra.mxu0 %v1604
    %v2318 = vpop.f32.mrf.mxu0
    %v2319 = vadd.f32 %v2305, %v2318
    %v2320 = vpop.f32.mrf.mxu0
    %v2321 = vadd.f32 %v2307, %v2320
    %2322 = vdwg.mxu0
    %2323 = vmatpush.bf16.msra.mxu0 %v2070
    %2324 = vmatpush.bf16.msra.mxu0 %v2068
    %2325 = vmatpush.bf16.msra.mxu0 %v2066
    %2326 = vmatpush.bf16.msra.mxu0 %v2064
    %2327 = vmatpush.bf16.msra.mxu0 %v2062
    %2328 = vmatpush.bf16.msra.mxu0 %v2060
    %2329 = vmatpush.bf16.msra.mxu0 %v2058
    %2330 = vmatpush.bf16.msra.mxu0 %v2056
    %2331 = vmatmul.bf16.gmra.mxu0 %v1605
    %v2332 = vpop.f32.mrf.mxu0
    %v2333 = vadd.f32 %v2319, %v2332
    %v2334 = vpop.f32.mrf.mxu0
    %v2335 = vadd.f32 %v2321, %v2334
    %2336 = vdwg.mxu0
    %2337 = vmatpush.bf16.msra.mxu0 %v2086
    %2338 = vmatpush.bf16.msra.mxu0 %v2084
    %2339 = vmatpush.bf16.msra.mxu0 %v2082
    %2340 = vmatpush.bf16.msra.mxu0 %v2080
    %2341 = vmatpush.bf16.msra.mxu0 %v2078
    %2342 = vmatpush.bf16.msra.mxu0 %v2076
    %2343 = vmatpush.bf16.msra.mxu0 %v2074
    %2344 = vmatpush.bf16.msra.mxu0 %v2072
    %2345 = vmatmul.bf16.gmra.mxu0 %v1606
    %v2346 = vpop.f32.mrf.mxu0
    %v2347 = vadd.f32 %v2333, %v2346
    %v2348 = vpop.f32.mrf.mxu0
    %v2349 = vadd.f32 %v2335, %v2348
    %2350 = vdwg.mxu0
    %v2351 = vmax.f32 %v2263, 0.0
    %v2352 = vmax.f32 %v2347, 0.0
    %v2353 = vmax.f32 %v2265, 0.0
    %v2354 = vmax.f32 %v2349, 0.0
    %v2355 = vadd.f32 %v2351, %v650
    %v2356 = vadd.f32 %v2352, %v692
    %v2357 = vadd.f32 %v2353, %v652
    %v2358 = vadd.f32 %v2354, %v694
    %2359 = vst [vmem:[%s5] sm:$0xff] %v2355
    %2360 = vst [vmem:[%s5 + $0x8] sm:$0xff] %v2356
    %2361 = vst [vmem:[%s5 + $0x10] sm:$0xff] %v2357
    %2362 = vst [vmem:[%s5 + $0x18] sm:$0xff] %v2358
    // Predicated region
    $region34: #{down0_forward.1} parent=1 // pred_check
      _
    $region35: #{down0_forward.1} parent=1 // pred_check_branch
      %2364 = sbr.rel (0) target = $region37
    $region36: #{down0_forward.1} parent=1 // pred_region
      _
    $region37: #{down0_forward.1} parent=1 // pred_fallthru
      _
    // Predicated region
    $region38: #{down0_forward.1} parent=1 // pred_check
      _
    $region39: #{down0_forward.1} parent=1 // pred_check_branch
      %2366 = sbr.rel (0) target = $region41
    $region40: #{down0_forward.1} parent=1 // pred_region
      _
    $region41: #{down0_forward.1} parent=1 // pred_fallthru
      _
    %2367 = vsyncpa [#allocation6], 1
    %2368 = vsyncpa [#allocation8], 1

</llo_original>
